<compile_context>
chip_gen: v7x
topology: tpu7x:2x2x1
jax: 0.10.0
libtpu: 0.0.40
codegen_flags: <defaults>
</compile_context>

<pallas_src>
import functools

import jax
import jax.numpy as jnp
from jax.experimental import pallas as pl
from jax.experimental.pallas import tpu as pltpu


def _pinn_kernel(n_layers, *refs):
    """One batch tile of the packed PINN forward pass.

    refs = (x_ref, w_0..w_{L-1}, b_0..b_{L-1}, o_ref)
      x_ref: (G*p0,    TILE_BI)  packed input tile (batch groups on sublanes)
      w_i:   (G*p_out, G*p_in)   block-diagonal effective weight, VMEM-resident
      b_i:   (G*p_out, 1)        packed bias, f32, VMEM-resident
      o_ref: (G*p_L,   TILE_BI)  packed output tile
    """
    x_ref = refs[0]
    w_refs = refs[1:1 + n_layers]
    b_refs = refs[1 + n_layers:1 + 2 * n_layers]
    o_ref = refs[1 + 2 * n_layers]

    h = x_ref[...]                                       # f32 activations
    for i in range(n_layers):
        w = w_refs[i][...]                               # full resident block
        h = jnp.dot(w, h.astype(w.dtype),                # bf16 (or f32) operands
                    preferred_element_type=jnp.float32)  # f32 accumulation
        h = h + b_refs[i][...]                           # (G*p_out, 1) broadcast
        if i < n_layers - 1:                             # SiLU on all but last layer
            h = h * jax.nn.sigmoid(h)
    o_ref[...] = h.astype(o_ref.dtype)


def _pad_dim(d, group):
    """Smallest p >= d such that group*p is a multiple of 8 (sublane granule)."""
    p = d
    while (p * group) % 8:
        p += 1
    return p


def _choose_tile_b(batch, group, *, n_cores=2, max_tile_b=8192):
    """Batch tile: multiple of group*128, large (amortize ~0.35us/step), but
    sized so the grid keeps >= 2*n_cores balanced tiles when the batch allows
    (v7x has 2 TCs; the 'parallel' axis shards tiles across them)."""
    unit = group * 128
    max_tile_b = max(unit, (max_tile_b // unit) * unit)
    target_tiles = 2 * n_cores
    tb = -(-batch // target_tiles)          # ceil(batch / target_tiles)
    tb = -(-tb // unit) * unit              # round up to the tile granule
    return int(min(max(tb, unit), max_tile_b))


def pinn_forward(x, mean, sig, params, *, tile_b=None, dot_dtype=jnp.bfloat16,
                 max_tile_b=8192):
    """PINN forward.  x: (B, in_f).  params: list of (v (in,out), g (out,), b (out,))."""
    n_layers = len(params)
    layer_dims = [params[0][0].shape[0]] + [p[0].shape[1] for p in params]
    in_f, out_f = layer_dims[0], layer_dims[-1]
    batch = x.shape[0]

    feat = max(layer_dims)
    group = max(1, 128 // feat)                    # batch groups packed per MXU pass
    pdims = [_pad_dim(d, group) for d in layer_dims]

    # ---- Hoisted, grid-invariant precompute: weight-norm + normalization fold
    # ---- + block-diagonal packing.  (torch semantics: no epsilon on 1/sig.)
    inv_sig = (1.0 / sig).astype(jnp.float32)
    shift = mean.astype(jnp.float32) * inv_sig
    eye_g = jnp.eye(group, dtype=jnp.float32)

    w_slabs, b_slabs = [], []
    for i, (v, g, b) in enumerate(params):
        # torch weight_norm(dim=0) on Linear: per-output-row norm.  v is stored
        # (in, out), so this is a column norm; W_eff = g * v / ||v||, transposed
        # to (out, in) for the (features, batch) layout.
        norm = jnp.sqrt(jnp.sum(v * v, axis=0, keepdims=True))            # (1, out)
        w = (v * (g.reshape(1, -1) / norm)).T.astype(jnp.float32)         # (out, in)
        b = b.astype(jnp.float32)
        if i == 0:                                  # fold (x - mean) / sig into layer 0
            b = b - w @ shift
            w = w * inv_sig[None, :]
        d_out, d_in = w.shape
        pw = jnp.zeros((pdims[i + 1], pdims[i]), jnp.float32).at[:d_out, :d_in].set(w)
        pb = jnp.zeros((pdims[i + 1],), jnp.float32).at[:d_out].set(b)
        w_slabs.append(jnp.kron(eye_g, pw).astype(dot_dtype))             # (G*p_out, G*p_in)
        b_slabs.append(jnp.tile(pb, group).reshape(group * pdims[i + 1], 1))

    # ---- Lane-dense packed layout: (G * features, batch/G), batch padded to the tile.
    if tile_b is None:
        tile_b = _choose_tile_b(batch, group, max_tile_b=max_tile_b)
    unit = group * 128
    assert tile_b % unit == 0, (tile_b, unit)
    tile_bi = tile_b // group
    padded_b = -(-batch // tile_b) * tile_b
    n_tiles = padded_b // tile_b

    # Pack: row = g*p0 + f, col = t*tile_bi + j  <->  batch index t*tile_b + g*tile_bi + j.
    # (These reshapes/transposes are wrapper-side XLA passes; callers that can
    #  keep the packed layout end-to-end can skip them entirely.)
    xpad = x.astype(jnp.float32)
    if padded_b != batch:
        xpad = jnp.pad(xpad, ((0, padded_b - batch), (0, 0)))
    x4 = xpad.reshape(n_tiles, group, tile_bi, in_f).transpose(1, 3, 0, 2)
    xp = jnp.zeros((group, pdims[0], n_tiles, tile_bi), jnp.float32)
    xp = xp.at[:, :in_f].set(x4).reshape(group * pdims[0], n_tiles * tile_bi)

    in_rows = group * pdims[0]
    out_rows = group * pdims[-1]

    in_specs = [pl.BlockSpec((in_rows, tile_bi), lambda i: (0, i))]            # streamed
    in_specs += [pl.BlockSpec(w.shape, lambda i: (0, 0)) for w in w_slabs]     # resident
    in_specs += [pl.BlockSpec(b.shape, lambda i: (0, 0)) for b in b_slabs]     # resident

    kernel = functools.partial(_pinn_kernel, n_layers)
    out_p = pl.pallas_call(
        kernel,
        out_shape=jax.ShapeDtypeStruct((out_rows, n_tiles * tile_bi), jnp.float32),
        grid_spec=pltpu.PrefetchScalarGridSpec(
            num_scalar_prefetch=0,
            grid=(n_tiles,),
            in_specs=in_specs,
            out_specs=pl.BlockSpec((out_rows, tile_bi), lambda i: (0, i)),
        ),
        compiler_params=pltpu.CompilerParams(
            dimension_semantics=("parallel",)),        # shard batch tiles across v7x TCs
    )(xp, *w_slabs, *b_slabs)

    # ---- Unpack (G, p_L, n_tiles, tile_bi) -> (batch, out_f).
    out = out_p.reshape(group, pdims[-1], n_tiles, tile_bi)[:, :out_f]
    out = out.transpose(2, 0, 3, 1).reshape(padded_b, out_f)
    return out[:batch]


def _reference_forward(x, mean, sig, params):
    h = (x - mean) / sig
    n = len(params)
    for i, (v, g, b) in enumerate(params):
        norm = jnp.sqrt(jnp.sum(v * v, axis=0, keepdims=True))
        w = v * (g.reshape(1, -1) / norm)
        h = h @ w + b.reshape(1, -1)
        if i < n - 1:
            h = h * jax.nn.sigmoid(h)
    return h


def init_params(key, layer_list):
    """Deterministic init. g is initialized to ||v|| (torch weight_norm default),
    so the effective initial weight equals v."""
    params = []
    for in_n, out_n in zip(layer_list[:-1], layer_list[1:]):
        key, kv, kb = jax.random.split(key, 3)
        bound = 1.0 / jnp.sqrt(in_n)
        v = jax.random.uniform(kv, (in_n, out_n), jnp.float32, -bound, bound)
        g = jnp.sqrt(jnp.sum(v * v, axis=0))  # (out,)
        b = jax.random.uniform(kb, (out_n,), jnp.float32, -bound, bound)
        params.append((v, g, b))
    return params


if __name__ == "__main__":
    key = jax.random.PRNGKey(0)
    k_data, k_x, k_p = jax.random.split(key, 3)

    layer_list = [8, 32, 32, 32, 4]   # [in, hidden..., out]
    batch = 1024                      # 2 grid steps (512-wide tiles, G=4 packing)

    # "data" used only to derive mean / sig (torch: data.mean(0), sqrt(data.var(0)))
    data = jax.random.normal(k_data, (64, layer_list[0]), jnp.float32) * 2.0 + 0.5
    mean = jnp.mean(data, axis=0)
    sig = jnp.sqrt(jnp.var(data, axis=0, ddof=1))   # torch .var() is unbiased

    x = jax.random.normal(k_x, (batch, layer_list[0]), jnp.float32)
    params = init_params(k_p, layer_list)

    ref = _reference_forward(x, mean, sig, params)

    # Fast path: bf16 MXU operands, f32 accumulation (loose tolerance for bf16 weights).
    fwd = jax.jit(pinn_forward)
    out = jax.block_until_ready(fwd(x, mean, sig, params))
    assert out.shape == (batch, layer_list[-1])
    assert jnp.allclose(out, ref, atol=1e-2, rtol=1e-2), float(jnp.max(jnp.abs(out - ref)))

    # Exact path: f32 dot operands (same default lowering as the previously
    # validated kernel), tight tolerance.
    fwd_f32 = jax.jit(functools.partial(pinn_forward, dot_dtype=jnp.float32))
    out32 = jax.block_until_ready(fwd_f32(x, mean, sig, params))
    assert jnp.allclose(out32, ref, atol=1e-4, rtol=1e-4), float(jnp.max(jnp.abs(out32 - ref)))

    print("KERNEL_OK")
</pallas_src>

<mosaic_0001>
module attributes {stable_mosaic.version = 11 : i64} {
  func.func @_pinn_kernel(%arg0: i32, %arg1: memref<32x128xf32, #tpu.memory_space<vmem>>, %arg2: memref<128x32xbf16, #tpu.memory_space<vmem>>, %arg3: memref<128x128xbf16, #tpu.memory_space<vmem>>, %arg4: memref<128x128xbf16, #tpu.memory_space<vmem>>, %arg5: memref<16x128xbf16, #tpu.memory_space<vmem>>, %arg6: memref<128x1xf32, #tpu.memory_space<vmem>>, %arg7: memref<128x1xf32, #tpu.memory_space<vmem>>, %arg8: memref<128x1xf32, #tpu.memory_space<vmem>>, %arg9: memref<16x1xf32, #tpu.memory_space<vmem>>, %arg10: memref<16x128xf32, #tpu.memory_space<vmem>>) attributes {dimension_semantics = [#tpu.dimension_semantics<parallel>], iteration_bounds = array<i64: 2>, scalar_prefetch = 0 : i64, scratch_operands = 0 : i64, tpu.core_type = #tpu.core_type<tc>, window_params = [{transform_indices = @transform_0, window_bounds = array<i64: 32, 128>}, {pipeline_mode = #tpu.pipeline_mode<synchronous>, transform_indices = @transform_1, window_bounds = array<i64: 128, 32>}, {pipeline_mode = #tpu.pipeline_mode<synchronous>, transform_indices = @transform_2, window_bounds = array<i64: 128, 128>}, {pipeline_mode = #tpu.pipeline_mode<synchronous>, transform_indices = @transform_3, window_bounds = array<i64: 128, 128>}, {pipeline_mode = #tpu.pipeline_mode<synchronous>, transform_indices = @transform_4, window_bounds = array<i64: 16, 128>}, {pipeline_mode = #tpu.pipeline_mode<synchronous>, transform_indices = @transform_5, window_bounds = array<i64: 128, 1>}, {pipeline_mode = #tpu.pipeline_mode<synchronous>, transform_indices = @transform_6, window_bounds = array<i64: 128, 1>}, {pipeline_mode = #tpu.pipeline_mode<synchronous>, transform_indices = @transform_7, window_bounds = array<i64: 128, 1>}, {pipeline_mode = #tpu.pipeline_mode<synchronous>, transform_indices = @transform_8, window_bounds = array<i64: 16, 1>}, {transform_indices = @transform_9, window_bounds = array<i64: 16, 128>}]} {
    %c0 = arith.constant 0 : index
    %c0_0 = arith.constant 0 : index
    %0 = vector.load %arg1[%c0, %c0_0] : memref<32x128xf32, #tpu.memory_space<vmem>>, vector<32x128xf32>
    %c0_1 = arith.constant 0 : index
    %c0_2 = arith.constant 0 : index
    %1 = vector.load %arg2[%c0_1, %c0_2] : memref<128x32xbf16, #tpu.memory_space<vmem>>, vector<128x32xbf16>
    %2 = arith.truncf %0 : vector<32x128xf32> to vector<32x128xbf16>
    %cst = arith.constant dense<0.000000e+00> : vector<128x128xf32>
    %3 = tpu.matmul %1, %2, %cst {dimension_numbers = #tpu.dot_dimension_numbers<[1], [0], [0], [1], [0, 0, 1, 1], [], []>} : vector<128x32xbf16>, vector<32x128xbf16>, vector<128x128xf32> -> vector<128x128xf32>
    %c0_3 = arith.constant 0 : index
    %c0_4 = arith.constant 0 : index
    %4 = vector.load %arg6[%c0_3, %c0_4] : memref<128x1xf32, #tpu.memory_space<vmem>>, vector<128x1xf32>
    %5 = vector.broadcast %4 : vector<128x1xf32> to vector<128x128xf32>
    %6 = arith.addf %3, %5 : vector<128x128xf32>
    %7 = arith.negf %6 : vector<128x128xf32>
    %8 = math.exp %7 : vector<128x128xf32>
    %cst_5 = arith.constant 1.000000e+00 : f32
    %9 = vector.broadcast %cst_5 : f32 to vector<128x128xf32>
    %10 = arith.addf %9, %8 : vector<128x128xf32>
    %11 = arith.divf %9, %10 : vector<128x128xf32>
    %12 = arith.mulf %6, %11 : vector<128x128xf32>
    %c0_6 = arith.constant 0 : index
    %c0_7 = arith.constant 0 : index
    %13 = vector.load %arg3[%c0_6, %c0_7] : memref<128x128xbf16, #tpu.memory_space<vmem>>, vector<128x128xbf16>
    %14 = arith.truncf %12 : vector<128x128xf32> to vector<128x128xbf16>
    %cst_8 = arith.constant dense<0.000000e+00> : vector<128x128xf32>
    %15 = tpu.matmul %13, %14, %cst_8 {dimension_numbers = #tpu.dot_dimension_numbers<[1], [0], [0], [1], [0, 0, 1, 1], [], []>} : vector<128x128xbf16>, vector<128x128xbf16>, vector<128x128xf32> -> vector<128x128xf32>
    %c0_9 = arith.constant 0 : index
    %c0_10 = arith.constant 0 : index
    %16 = vector.load %arg7[%c0_9, %c0_10] : memref<128x1xf32, #tpu.memory_space<vmem>>, vector<128x1xf32>
    %17 = vector.broadcast %16 : vector<128x1xf32> to vector<128x128xf32>
    %18 = arith.addf %15, %17 : vector<128x128xf32>
    %19 = arith.negf %18 : vector<128x128xf32>
    %20 = math.exp %19 : vector<128x128xf32>
    %cst_11 = arith.constant 1.000000e+00 : f32
    %21 = vector.broadcast %cst_11 : f32 to vector<128x128xf32>
    %22 = arith.addf %21, %20 : vector<128x128xf32>
    %23 = arith.divf %21, %22 : vector<128x128xf32>
    %24 = arith.mulf %18, %23 : vector<128x128xf32>
    %c0_12 = arith.constant 0 : index
    %c0_13 = arith.constant 0 : index
    %25 = vector.load %arg4[%c0_12, %c0_13] : memref<128x128xbf16, #tpu.memory_space<vmem>>, vector<128x128xbf16>
    %26 = arith.truncf %24 : vector<128x128xf32> to vector<128x128xbf16>
    %cst_14 = arith.constant dense<0.000000e+00> : vector<128x128xf32>
    %27 = tpu.matmul %25, %26, %cst_14 {dimension_numbers = #tpu.dot_dimension_numbers<[1], [0], [0], [1], [0, 0, 1, 1], [], []>} : vector<128x128xbf16>, vector<128x128xbf16>, vector<128x128xf32> -> vector<128x128xf32>
    %c0_15 = arith.constant 0 : index
    %c0_16 = arith.constant 0 : index
    %28 = vector.load %arg8[%c0_15, %c0_16] : memref<128x1xf32, #tpu.memory_space<vmem>>, vector<128x1xf32>
    %29 = vector.broadcast %28 : vector<128x1xf32> to vector<128x128xf32>
    %30 = arith.addf %27, %29 : vector<128x128xf32>
    %31 = arith.negf %30 : vector<128x128xf32>
    %32 = math.exp %31 : vector<128x128xf32>
    %cst_17 = arith.constant 1.000000e+00 : f32
    %33 = vector.broadcast %cst_17 : f32 to vector<128x128xf32>
    %34 = arith.addf %33, %32 : vector<128x128xf32>
    %35 = arith.divf %33, %34 : vector<128x128xf32>
    %36 = arith.mulf %30, %35 : vector<128x128xf32>
    %c0_18 = arith.constant 0 : index
    %c0_19 = arith.constant 0 : index
    %37 = vector.load %arg5[%c0_18, %c0_19] : memref<16x128xbf16, #tpu.memory_space<vmem>>, vector<16x128xbf16>
    %38 = arith.truncf %36 : vector<128x128xf32> to vector<128x128xbf16>
    %cst_20 = arith.constant dense<0.000000e+00> : vector<16x128xf32>
    %39 = tpu.matmul %37, %38, %cst_20 {dimension_numbers = #tpu.dot_dimension_numbers<[1], [0], [0], [1], [0, 0, 1, 1], [], []>} : vector<16x128xbf16>, vector<128x128xbf16>, vector<16x128xf32> -> vector<16x128xf32>
    %c0_21 = arith.constant 0 : index
    %c0_22 = arith.constant 0 : index
    %40 = vector.load %arg9[%c0_21, %c0_22] : memref<16x1xf32, #tpu.memory_space<vmem>>, vector<16x1xf32>
    %41 = vector.broadcast %40 : vector<16x1xf32> to vector<16x128xf32>
    %42 = arith.addf %39, %41 : vector<16x128xf32>
    %c0_23 = arith.constant 0 : index
    %c0_24 = arith.constant 0 : index
    %43 = vector.load %arg10[%c0_23, %c0_24] : memref<16x128xf32, #tpu.memory_space<vmem>>, vector<16x128xf32>
    tpu.vector_store %arg10[%c0_23, %c0_24], %42 {strides = array<i32>} : memref<16x128xf32, #tpu.memory_space<vmem>>, vector<16x128xf32>,
    return
  }
  func.func @transform_0(%arg0: i32) -> (i32, i32) {
    %c0_i32 = arith.constant 0 : i32
    %c0_i32_0 = arith.constant 0 : i32
    return %c0_i32, %arg0 : i32, i32
  }
  func.func @transform_1(%arg0: i32) -> (i32, i32) {
    %c0_i32 = arith.constant 0 : i32
    %c0_i32_0 = arith.constant 0 : i32
    %c0_i32_1 = arith.constant 0 : i32
    return %c0_i32, %c0_i32_0 : i32, i32
  }
  func.func @transform_2(%arg0: i32) -> (i32, i32) {
    %c0_i32 = arith.constant 0 : i32
    %c0_i32_0 = arith.constant 0 : i32
    %c0_i32_1 = arith.constant 0 : i32
    return %c0_i32, %c0_i32_0 : i32, i32
  }
  func.func @transform_3(%arg0: i32) -> (i32, i32) {
    %c0_i32 = arith.constant 0 : i32
    %c0_i32_0 = arith.constant 0 : i32
    %c0_i32_1 = arith.constant 0 : i32
    return %c0_i32, %c0_i32_0 : i32, i32
  }
  func.func @transform_4(%arg0: i32) -> (i32, i32) {
    %c0_i32 = arith.constant 0 : i32
    %c0_i32_0 = arith.constant 0 : i32
    %c0_i32_1 = arith.constant 0 : i32
    return %c0_i32, %c0_i32_0 : i32, i32
  }
  func.func @transform_5(%arg0: i32) -> (i32, i32) {
    %c0_i32 = arith.constant 0 : i32
    %c0_i32_0 = arith.constant 0 : i32
    %c0_i32_1 = arith.constant 0 : i32
    return %c0_i32, %c0_i32_0 : i32, i32
  }
  func.func @transform_6(%arg0: i32) -> (i32, i32) {
    %c0_i32 = arith.constant 0 : i32
    %c0_i32_0 = arith.constant 0 : i32
    %c0_i32_1 = arith.constant 0 : i32
    return %c0_i32, %c0_i32_0 : i32, i32
  }
  func.func @transform_7(%arg0: i32) -> (i32, i32) {
    %c0_i32 = arith.constant 0 : i32
    %c0_i32_0 = arith.constant 0 : i32
    %c0_i32_1 = arith.constant 0 : i32
    return %c0_i32, %c0_i32_0 : i32, i32
  }
  func.func @transform_8(%arg0: i32) -> (i32, i32) {
    %c0_i32 = arith.constant 0 : i32
    %c0_i32_0 = arith.constant 0 : i32
    %c0_i32_1 = arith.constant 0 : i32
    return %c0_i32, %c0_i32_0 : i32, i32
  }
  func.func @transform_9(%arg0: i32) -> (i32, i32) {
    %c0_i32 = arith.constant 0 : i32
    %c0_i32_0 = arith.constant 0 : i32
    return %c0_i32, %arg0 : i32, i32
  }
}

</mosaic_0001>

<llo_original>
// kernel: sub.1
$region0: #{sub.1}
  #allocation0 [shape = 's32[1]{0}', space=sflag, size = 0x4, scoped, tag = 'scoped memory for sub.1']
  %s0 = inlined_call_operand.vmem [shape: f32[32], index: 0, kind: input, shape index: {}]
  %s1 = inlined_call_operand.vmem [shape: f32[32], index: 1, kind: input, shape index: {}]
  %s2 = inlined_call_operand.vmem [shape: f32[32], index: 2, kind: output, shape index: {}]
  %v3 = vld [vmem:[%s0] sm:$0x1]
  %v4 = vld [vmem:[%s1] sm:$0x1]
  %5 = xla_tuple %v3, %v4
  %6 = xla_tuple %5
  %v7 = vsub.f32 %v3, %v4
  %8 = xla_tuple %v7
  %9 = vst [vmem:[%s2] sm:$0x1] %v7

// kernel: tile.23
$region0: #{tile.23}
  #allocation0 [shape = 's32[1]{0}', space=sflag, size = 0x4, scoped, tag = 'scoped memory for tile.23']
  %s0 = inlined_call_operand.vmem [shape: f32[32], index: 0, kind: input, shape index: {}]
  %s1 = inlined_call_operand.vmem [shape: f32[4,32], index: 1, kind: output, shape index: {}]
  // Predicated region
  $region2: #{tile.23} parent=0 // pred_check
    _
  $region3: #{tile.23} parent=0 // pred_check_branch
    %3 = sbr.rel (0) target = $region5
  $region4: #{tile.23} parent=0 // pred_region
    _
  $region5: #{tile.23} parent=0 // pred_fallthru
    _
  %v4 = vld [vmem:[%s0] ss:$0 sm:$0xff]
  %5 = vst [vmem:[%s1] sm:$0xf] %v4

// kernel: tile.0
$region0: #{tile.0}
  %s0 = inlined_call_operand.vmem [shape: f32[4,32], index: 0, kind: input, shape index: {}]
  %s1 = inlined_call_operand.vmem [shape: f32[128,1], index: 1, kind: output, shape index: {}]
  $region1: #{tile.0} parent=0
    #allocation0 [shape = 'u8[4096]{0}', space=vmem, size = 0x1000, scoped, tag = 'scoped mem for input reshape']
    %s3 = sshllo.u32 0, 4
    %v4 = vld [vmem:[%s0] sm:%s3]
    %5 = vst [vmem:[#allocation0] sm:%s3] %v4
    %v6 = vld [vmem:[#allocation0] sm:$0xf]
    %vm7 = vcmask 7168
    %8 = vst.msk [vmem:[%s1] sm:$0x1] %vm7, %v6
    %s9 = scalar_lea.vmem %s1, 31
    %10 = vst.msk [vmem:[%s9] sm:$0x2] %vm7, %v6
    %s11 = scalar_lea.vmem %s1, 62
    %12 = vst.msk [vmem:[%s11] sm:$0x4] %vm7, %v6
    %s13 = scalar_lea.vmem %s1, 93
    %14 = vst.msk [vmem:[%s13] sm:$0x8] %vm7, %v6
    %v15 = vld [vmem:[#allocation0] sm:$0xf]
    %16 = vrot.lane.b32.xlu0 %v15, 127
    %v17 = vpop.permute.xlu0 %16
    %vm18 = vcmask 7168
    %s19 = scalar_lea.vmem %s1, 1
    %20 = vst.msk [vmem:[%s19] sm:$0x1] %vm18, %v17
    %s21 = scalar_lea.vmem %s1, 32
    %22 = vst.msk [vmem:[%s21] sm:$0x2] %vm18, %v17
    %s23 = scalar_lea.vmem %s1, 63
    %24 = vst.msk [vmem:[%s23] sm:$0x4] %vm18, %v17
    %s25 = scalar_lea.vmem %s1, 94
    %26 = vst.msk [vmem:[%s25] sm:$0x8] %vm18, %v17
    %v27 = vld [vmem:[#allocation0] sm:$0xf]
    %28 = vrot.lane.b32.xlu0 %v27, 126
    %v29 = vpop.permute.xlu0 %28
    %vm30 = vcmask 7168
    %s31 = scalar_lea.vmem %s1, 2
    %32 = vst.msk [vmem:[%s31] sm:$0x1] %vm30, %v29
    %s33 = scalar_lea.vmem %s1, 33
    %34 = vst.msk [vmem:[%s33] sm:$0x2] %vm30, %v29
    %s35 = scalar_lea.vmem %s1, 64
    %36 = vst.msk [vmem:[%s35] sm:$0x4] %vm30, %v29
    %s37 = scalar_lea.vmem %s1, 95
    %38 = vst.msk [vmem:[%s37] sm:$0x8] %vm30, %v29
    %v39 = vld [vmem:[#allocation0] sm:$0xf]
    %40 = vrot.lane.b32.xlu0 %v39, 125
    %v41 = vpop.permute.xlu0 %40
    %vm42 = vcmask 7168
    %s43 = scalar_lea.vmem %s1, 3
    %44 = vst.msk [vmem:[%s43] sm:$0x1] %vm42, %v41
    %s45 = scalar_lea.vmem %s1, 34
    %46 = vst.msk [vmem:[%s45] sm:$0x2] %vm42, %v41
    %s47 = scalar_lea.vmem %s1, 65
    %48 = vst.msk [vmem:[%s47] sm:$0x4] %vm42, %v41
    %s49 = scalar_lea.vmem %s1, 96
    %50 = vst.msk [vmem:[%s49] sm:$0x8] %vm42, %v41
    %v51 = vld [vmem:[#allocation0] sm:$0xf]
    %52 = vrot.lane.b32.xlu0 %v51, 124
    %v53 = vpop.permute.xlu0 %52
    %vm54 = vcmask 7168
    %s55 = scalar_lea.vmem %s1, 4
    %56 = vst.msk [vmem:[%s55] sm:$0x1] %vm54, %v53
    %s57 = scalar_lea.vmem %s1, 35
    %58 = vst.msk [vmem:[%s57] sm:$0x2] %vm54, %v53
    %s59 = scalar_lea.vmem %s1, 66
    %60 = vst.msk [vmem:[%s59] sm:$0x4] %vm54, %v53
    %s61 = scalar_lea.vmem %s1, 97
    %62 = vst.msk [vmem:[%s61] sm:$0x8] %vm54, %v53
    %v63 = vld [vmem:[#allocation0] sm:$0xf]
    %64 = vrot.lane.b32.xlu0 %v63, 123
    %v65 = vpop.permute.xlu0 %64
    %vm66 = vcmask 7168
    %s67 = scalar_lea.vmem %s1, 5
    %68 = vst.msk [vmem:[%s67] sm:$0x1] %vm66, %v65
    %s69 = scalar_lea.vmem %s1, 36
    %70 = vst.msk [vmem:[%s69] sm:$0x2] %vm66, %v65
    %s71 = scalar_lea.vmem %s1, 67
    %72 = vst.msk [vmem:[%s71] sm:$0x4] %vm66, %v65
    %s73 = scalar_lea.vmem %s1, 98
    %74 = vst.msk [vmem:[%s73] sm:$0x8] %vm66, %v65
    %v75 = vld [vmem:[#allocation0] sm:$0xf]
    %76 = vrot.lane.b32.xlu0 %v75, 122
    %v77 = vpop.permute.xlu0 %76
    %vm78 = vcmask 7168
    %s79 = scalar_lea.vmem %s1, 6
    %80 = vst.msk [vmem:[%s79] sm:$0x1] %vm78, %v77
    %s81 = scalar_lea.vmem %s1, 37
    %82 = vst.msk [vmem:[%s81] sm:$0x2] %vm78, %v77
    %s83 = scalar_lea.vmem %s1, 68
    %84 = vst.msk [vmem:[%s83] sm:$0x4] %vm78, %v77
    %s85 = scalar_lea.vmem %s1, 99
    %86 = vst.msk [vmem:[%s85] sm:$0x8] %vm78, %v77
    %v87 = vld [vmem:[#allocation0] sm:$0xf]
    %88 = vrot.lane.b32.xlu0 %v87, 121
    %v89 = vpop.permute.xlu0 %88
    %vm90 = vcmask 7168
    %s91 = scalar_lea.vmem %s1, 7
    %92 = vst.msk [vmem:[%s91] sm:$0x1] %vm90, %v89
    %s93 = scalar_lea.vmem %s1, 38
    %94 = vst.msk [vmem:[%s93] sm:$0x2] %vm90, %v89
    %s95 = scalar_lea.vmem %s1, 69
    %96 = vst.msk [vmem:[%s95] sm:$0x4] %vm90, %v89
    %s97 = scalar_lea.vmem %s1, 100
    %98 = vst.msk [vmem:[%s97] sm:$0x8] %vm90, %v89
    %v99 = vld [vmem:[#allocation0] sm:$0xf]
    %100 = vrot.lane.b32.xlu0 %v99, 120
    %v101 = vpop.permute.xlu0 %100
    %vm102 = vcmask 7168
    %s103 = scalar_lea.vmem %s1, 8
    %104 = vst.msk [vmem:[%s103] sm:$0x1] %vm102, %v101
    %s105 = scalar_lea.vmem %s1, 39
    %106 = vst.msk [vmem:[%s105] sm:$0x2] %vm102, %v101
    %s107 = scalar_lea.vmem %s1, 70
    %108 = vst.msk [vmem:[%s107] sm:$0x4] %vm102, %v101
    %s109 = scalar_lea.vmem %s1, 101
    %110 = vst.msk [vmem:[%s109] sm:$0x8] %vm102, %v101
    %v111 = vld [vmem:[#allocation0] sm:$0xf]
    %112 = vrot.lane.b32.xlu0 %v111, 119
    %v113 = vpop.permute.xlu0 %112
    %vm114 = vcmask 7168
    %s115 = scalar_lea.vmem %s1, 9
    %116 = vst.msk [vmem:[%s115] sm:$0x1] %vm114, %v113
    %s117 = scalar_lea.vmem %s1, 40
    %118 = vst.msk [vmem:[%s117] sm:$0x2] %vm114, %v113
    %s119 = scalar_lea.vmem %s1, 71
    %120 = vst.msk [vmem:[%s119] sm:$0x4] %vm114, %v113
    %s121 = scalar_lea.vmem %s1, 102
    %122 = vst.msk [vmem:[%s121] sm:$0x8] %vm114, %v113
    %v123 = vld [vmem:[#allocation0] sm:$0xf]
    %124 = vrot.lane.b32.xlu0 %v123, 118
    %v125 = vpop.permute.xlu0 %124
    %vm126 = vcmask 7168
    %s127 = scalar_lea.vmem %s1, 10
    %128 = vst.msk [vmem:[%s127] sm:$0x1] %vm126, %v125
    %s129 = scalar_lea.vmem %s1, 41
    %130 = vst.msk [vmem:[%s129] sm:$0x2] %vm126, %v125
    %s131 = scalar_lea.vmem %s1, 72
    %132 = vst.msk [vmem:[%s131] sm:$0x4] %vm126, %v125
    %s133 = scalar_lea.vmem %s1, 103
    %134 = vst.msk [vmem:[%s133] sm:$0x8] %vm126, %v125
    %v135 = vld [vmem:[#allocation0] sm:$0xf]
    %136 = vrot.lane.b32.xlu0 %v135, 117
    %v137 = vpop.permute.xlu0 %136
    %vm138 = vcmask 7168
    %s139 = scalar_lea.vmem %s1, 11
    %140 = vst.msk [vmem:[%s139] sm:$0x1] %vm138, %v137
    %s141 = scalar_lea.vmem %s1, 42
    %142 = vst.msk [vmem:[%s141] sm:$0x2] %vm138, %v137
    %s143 = scalar_lea.vmem %s1, 73
    %144 = vst.msk [vmem:[%s143] sm:$0x4] %vm138, %v137
    %s145 = scalar_lea.vmem %s1, 104
    %146 = vst.msk [vmem:[%s145] sm:$0x8] %vm138, %v137
    %v147 = vld [vmem:[#allocation0] sm:$0xf]
    %148 = vrot.lane.b32.xlu0 %v147, 116
    %v149 = vpop.permute.xlu0 %148
    %vm150 = vcmask 7168
    %s151 = scalar_lea.vmem %s1, 12
    %152 = vst.msk [vmem:[%s151] sm:$0x1] %vm150, %v149
    %s153 = scalar_lea.vmem %s1, 43
    %154 = vst.msk [vmem:[%s153] sm:$0x2] %vm150, %v149
    %s155 = scalar_lea.vmem %s1, 74
    %156 = vst.msk [vmem:[%s155] sm:$0x4] %vm150, %v149
    %s157 = scalar_lea.vmem %s1, 105
    %158 = vst.msk [vmem:[%s157] sm:$0x8] %vm150, %v149
    %v159 = vld [vmem:[#allocation0] sm:$0xf]
    %160 = vrot.lane.b32.xlu0 %v159, 115
    %v161 = vpop.permute.xlu0 %160
    %vm162 = vcmask 7168
    %s163 = scalar_lea.vmem %s1, 13
    %164 = vst.msk [vmem:[%s163] sm:$0x1] %vm162, %v161
    %s165 = scalar_lea.vmem %s1, 44
    %166 = vst.msk [vmem:[%s165] sm:$0x2] %vm162, %v161
    %s167 = scalar_lea.vmem %s1, 75
    %168 = vst.msk [vmem:[%s167] sm:$0x4] %vm162, %v161
    %s169 = scalar_lea.vmem %s1, 106
    %170 = vst.msk [vmem:[%s169] sm:$0x8] %vm162, %v161
    %v171 = vld [vmem:[#allocation0] sm:$0xf]
    %172 = vrot.lane.b32.xlu0 %v171, 114
    %v173 = vpop.permute.xlu0 %172
    %vm174 = vcmask 7168
    %s175 = scalar_lea.vmem %s1, 14
    %176 = vst.msk [vmem:[%s175] sm:$0x1] %vm174, %v173
    %s177 = scalar_lea.vmem %s1, 45
    %178 = vst.msk [vmem:[%s177] sm:$0x2] %vm174, %v173
    %s179 = scalar_lea.vmem %s1, 76
    %180 = vst.msk [vmem:[%s179] sm:$0x4] %vm174, %v173
    %s181 = scalar_lea.vmem %s1, 107
    %182 = vst.msk [vmem:[%s181] sm:$0x8] %vm174, %v173
    %v183 = vld [vmem:[#allocation0] sm:$0xf]
    %184 = vrot.lane.b32.xlu0 %v183, 113
    %v185 = vpop.permute.xlu0 %184
    %vm186 = vcmask 7168
    %s187 = scalar_lea.vmem %s1, 15
    %188 = vst.msk [vmem:[%s187] sm:$0x1] %vm186, %v185
    %s189 = scalar_lea.vmem %s1, 46
    %190 = vst.msk [vmem:[%s189] sm:$0x2] %vm186, %v185
    %s191 = scalar_lea.vmem %s1, 77
    %192 = vst.msk [vmem:[%s191] sm:$0x4] %vm186, %v185
    %s193 = scalar_lea.vmem %s1, 108
    %194 = vst.msk [vmem:[%s193] sm:$0x8] %vm186, %v185
    %v195 = vld [vmem:[#allocation0] sm:$0xf]
    %196 = vrot.lane.b32.xlu0 %v195, 112
    %v197 = vpop.permute.xlu0 %196
    %vm198 = vcmask 7168
    %s199 = scalar_lea.vmem %s1, 16
    %200 = vst.msk [vmem:[%s199] sm:$0x1] %vm198, %v197
    %s201 = scalar_lea.vmem %s1, 47
    %202 = vst.msk [vmem:[%s201] sm:$0x2] %vm198, %v197
    %s203 = scalar_lea.vmem %s1, 78
    %204 = vst.msk [vmem:[%s203] sm:$0x4] %vm198, %v197
    %s205 = scalar_lea.vmem %s1, 109
    %206 = vst.msk [vmem:[%s205] sm:$0x8] %vm198, %v197
    %v207 = vld [vmem:[#allocation0] sm:$0xf]
    %208 = vrot.lane.b32.xlu0 %v207, 111
    %v209 = vpop.permute.xlu0 %208
    %vm210 = vcmask 7168
    %s211 = scalar_lea.vmem %s1, 17
    %212 = vst.msk [vmem:[%s211] sm:$0x1] %vm210, %v209
    %s213 = scalar_lea.vmem %s1, 48
    %214 = vst.msk [vmem:[%s213] sm:$0x2] %vm210, %v209
    %s215 = scalar_lea.vmem %s1, 79
    %216 = vst.msk [vmem:[%s215] sm:$0x4] %vm210, %v209
    %s217 = scalar_lea.vmem %s1, 110
    %218 = vst.msk [vmem:[%s217] sm:$0x8] %vm210, %v209
    %v219 = vld [vmem:[#allocation0] sm:$0xf]
    %220 = vrot.lane.b32.xlu0 %v219, 110
    %v221 = vpop.permute.xlu0 %220
    %vm222 = vcmask 7168
    %s223 = scalar_lea.vmem %s1, 18
    %224 = vst.msk [vmem:[%s223] sm:$0x1] %vm222, %v221
    %s225 = scalar_lea.vmem %s1, 49
    %226 = vst.msk [vmem:[%s225] sm:$0x2] %vm222, %v221
    %s227 = scalar_lea.vmem %s1, 80
    %228 = vst.msk [vmem:[%s227] sm:$0x4] %vm222, %v221
    %s229 = scalar_lea.vmem %s1, 111
    %230 = vst.msk [vmem:[%s229] sm:$0x8] %vm222, %v221
    %v231 = vld [vmem:[#allocation0] sm:$0xf]
    %232 = vrot.lane.b32.xlu0 %v231, 109
    %v233 = vpop.permute.xlu0 %232
    %vm234 = vcmask 7168
    %s235 = scalar_lea.vmem %s1, 19
    %236 = vst.msk [vmem:[%s235] sm:$0x1] %vm234, %v233
    %s237 = scalar_lea.vmem %s1, 50
    %238 = vst.msk [vmem:[%s237] sm:$0x2] %vm234, %v233
    %s239 = scalar_lea.vmem %s1, 81
    %240 = vst.msk [vmem:[%s239] sm:$0x4] %vm234, %v233
    %s241 = scalar_lea.vmem %s1, 112
    %242 = vst.msk [vmem:[%s241] sm:$0x8] %vm234, %v233
    %v243 = vld [vmem:[#allocation0] sm:$0xf]
    %244 = vrot.lane.b32.xlu0 %v243, 108
    %v245 = vpop.permute.xlu0 %244
    %vm246 = vcmask 7168
    %s247 = scalar_lea.vmem %s1, 20
    %248 = vst.msk [vmem:[%s247] sm:$0x1] %vm246, %v245
    %s249 = scalar_lea.vmem %s1, 51
    %250 = vst.msk [vmem:[%s249] sm:$0x2] %vm246, %v245
    %s251 = scalar_lea.vmem %s1, 82
    %252 = vst.msk [vmem:[%s251] sm:$0x4] %vm246, %v245
    %s253 = scalar_lea.vmem %s1, 113
    %254 = vst.msk [vmem:[%s253] sm:$0x8] %vm246, %v245
    %v255 = vld [vmem:[#allocation0] sm:$0xf]
    %256 = vrot.lane.b32.xlu0 %v255, 107
    %v257 = vpop.permute.xlu0 %256
    %vm258 = vcmask 7168
    %s259 = scalar_lea.vmem %s1, 21
    %260 = vst.msk [vmem:[%s259] sm:$0x1] %vm258, %v257
    %s261 = scalar_lea.vmem %s1, 52
    %262 = vst.msk [vmem:[%s261] sm:$0x2] %vm258, %v257
    %s263 = scalar_lea.vmem %s1, 83
    %264 = vst.msk [vmem:[%s263] sm:$0x4] %vm258, %v257
    %s265 = scalar_lea.vmem %s1, 114
    %266 = vst.msk [vmem:[%s265] sm:$0x8] %vm258, %v257
    %v267 = vld [vmem:[#allocation0] sm:$0xf]
    %268 = vrot.lane.b32.xlu0 %v267, 106
    %v269 = vpop.permute.xlu0 %268
    %vm270 = vcmask 7168
    %s271 = scalar_lea.vmem %s1, 22
    %272 = vst.msk [vmem:[%s271] sm:$0x1] %vm270, %v269
    %s273 = scalar_lea.vmem %s1, 53
    %274 = vst.msk [vmem:[%s273] sm:$0x2] %vm270, %v269
    %s275 = scalar_lea.vmem %s1, 84
    %276 = vst.msk [vmem:[%s275] sm:$0x4] %vm270, %v269
    %s277 = scalar_lea.vmem %s1, 115
    %278 = vst.msk [vmem:[%s277] sm:$0x8] %vm270, %v269
    %v279 = vld [vmem:[#allocation0] sm:$0xf]
    %280 = vrot.lane.b32.xlu0 %v279, 105
    %v281 = vpop.permute.xlu0 %280
    %vm282 = vcmask 7168
    %s283 = scalar_lea.vmem %s1, 23
    %284 = vst.msk [vmem:[%s283] sm:$0x1] %vm282, %v281
    %s285 = scalar_lea.vmem %s1, 54
    %286 = vst.msk [vmem:[%s285] sm:$0x2] %vm282, %v281
    %s287 = scalar_lea.vmem %s1, 85
    %288 = vst.msk [vmem:[%s287] sm:$0x4] %vm282, %v281
    %s289 = scalar_lea.vmem %s1, 116
    %290 = vst.msk [vmem:[%s289] sm:$0x8] %vm282, %v281
    %v291 = vld [vmem:[#allocation0] sm:$0xf]
    %292 = vrot.lane.b32.xlu0 %v291, 104
    %v293 = vpop.permute.xlu0 %292
    %vm294 = vcmask 7168
    %s295 = scalar_lea.vmem %s1, 24
    %296 = vst.msk [vmem:[%s295] sm:$0x1] %vm294, %v293
    %s297 = scalar_lea.vmem %s1, 55
    %298 = vst.msk [vmem:[%s297] sm:$0x2] %vm294, %v293
    %s299 = scalar_lea.vmem %s1, 86
    %300 = vst.msk [vmem:[%s299] sm:$0x4] %vm294, %v293
    %s301 = scalar_lea.vmem %s1, 117
    %302 = vst.msk [vmem:[%s301] sm:$0x8] %vm294, %v293
    %v303 = vld [vmem:[#allocation0] sm:$0xf]
    %304 = vrot.lane.b32.xlu0 %v303, 103
    %v305 = vpop.permute.xlu0 %304
    %vm306 = vcmask 7168
    %s307 = scalar_lea.vmem %s1, 25
    %308 = vst.msk [vmem:[%s307] sm:$0x1] %vm306, %v305
    %s309 = scalar_lea.vmem %s1, 56
    %310 = vst.msk [vmem:[%s309] sm:$0x2] %vm306, %v305
    %s311 = scalar_lea.vmem %s1, 87
    %312 = vst.msk [vmem:[%s311] sm:$0x4] %vm306, %v305
    %s313 = scalar_lea.vmem %s1, 118
    %314 = vst.msk [vmem:[%s313] sm:$0x8] %vm306, %v305
    %v315 = vld [vmem:[#allocation0] sm:$0xf]
    %316 = vrot.lane.b32.xlu0 %v315, 102
    %v317 = vpop.permute.xlu0 %316
    %vm318 = vcmask 7168
    %s319 = scalar_lea.vmem %s1, 26
    %320 = vst.msk [vmem:[%s319] sm:$0x1] %vm318, %v317
    %s321 = scalar_lea.vmem %s1, 57
    %322 = vst.msk [vmem:[%s321] sm:$0x2] %vm318, %v317
    %s323 = scalar_lea.vmem %s1, 88
    %324 = vst.msk [vmem:[%s323] sm:$0x4] %vm318, %v317
    %s325 = scalar_lea.vmem %s1, 119
    %326 = vst.msk [vmem:[%s325] sm:$0x8] %vm318, %v317
    %v327 = vld [vmem:[#allocation0] sm:$0xf]
    %328 = vrot.lane.b32.xlu0 %v327, 101
    %v329 = vpop.permute.xlu0 %328
    %vm330 = vcmask 7168
    %s331 = scalar_lea.vmem %s1, 27
    %332 = vst.msk [vmem:[%s331] sm:$0x1] %vm330, %v329
    %s333 = scalar_lea.vmem %s1, 58
    %334 = vst.msk [vmem:[%s333] sm:$0x2] %vm330, %v329
    %s335 = scalar_lea.vmem %s1, 89
    %336 = vst.msk [vmem:[%s335] sm:$0x4] %vm330, %v329
    %s337 = scalar_lea.vmem %s1, 120
    %338 = vst.msk [vmem:[%s337] sm:$0x8] %vm330, %v329
    %v339 = vld [vmem:[#allocation0] sm:$0xf]
    %340 = vrot.lane.b32.xlu0 %v339, 100
    %v341 = vpop.permute.xlu0 %340
    %vm342 = vcmask 7168
    %s343 = scalar_lea.vmem %s1, 28
    %344 = vst.msk [vmem:[%s343] sm:$0x1] %vm342, %v341
    %s345 = scalar_lea.vmem %s1, 59
    %346 = vst.msk [vmem:[%s345] sm:$0x2] %vm342, %v341
    %s347 = scalar_lea.vmem %s1, 90
    %348 = vst.msk [vmem:[%s347] sm:$0x4] %vm342, %v341
    %s349 = scalar_lea.vmem %s1, 121
    %350 = vst.msk [vmem:[%s349] sm:$0x8] %vm342, %v341
    %v351 = vld [vmem:[#allocation0] sm:$0xf]
    %352 = vrot.lane.b32.xlu0 %v351, 99
    %v353 = vpop.permute.xlu0 %352
    %vm354 = vcmask 7168
    %s355 = scalar_lea.vmem %s1, 29
    %356 = vst.msk [vmem:[%s355] sm:$0x1] %vm354, %v353
    %s357 = scalar_lea.vmem %s1, 60
    %358 = vst.msk [vmem:[%s357] sm:$0x2] %vm354, %v353
    %s359 = scalar_lea.vmem %s1, 91
    %360 = vst.msk [vmem:[%s359] sm:$0x4] %vm354, %v353
    %s361 = scalar_lea.vmem %s1, 122
    %362 = vst.msk [vmem:[%s361] sm:$0x8] %vm354, %v353
    %v363 = vld [vmem:[#allocation0] sm:$0xf]
    %364 = vrot.lane.b32.xlu0 %v363, 98
    %v365 = vpop.permute.xlu0 %364
    %vm366 = vcmask 7168
    %s367 = scalar_lea.vmem %s1, 30
    %368 = vst.msk [vmem:[%s367] sm:$0x1] %vm366, %v365
    %s369 = scalar_lea.vmem %s1, 61
    %370 = vst.msk [vmem:[%s369] sm:$0x2] %vm366, %v365
    %s371 = scalar_lea.vmem %s1, 92
    %372 = vst.msk [vmem:[%s371] sm:$0x4] %vm366, %v365
    %s373 = scalar_lea.vmem %s1, 123
    %374 = vst.msk [vmem:[%s373] sm:$0x8] %vm366, %v365
    %v375 = vld [vmem:[#allocation0] sm:$0xf]
    %376 = vrot.lane.b32.xlu0 %v375, 97
    %v377 = vpop.permute.xlu0 %376
    %vm378 = vcmask 7168
    %s379 = scalar_lea.vmem %s1, 31
    %380 = vst.msk [vmem:[%s379] sm:$0x1] %vm378, %v377
    %s381 = scalar_lea.vmem %s1, 62
    %382 = vst.msk [vmem:[%s381] sm:$0x2] %vm378, %v377
    %s383 = scalar_lea.vmem %s1, 93
    %384 = vst.msk [vmem:[%s383] sm:$0x4] %vm378, %v377
    %s385 = scalar_lea.vmem %s1, 124
    %386 = vst.msk [vmem:[%s385] sm:$0x8] %vm378, %v377

// kernel: tile.38
$region0: #{tile.38}
  #allocation0 [shape = 's32[1]{0}', space=sflag, size = 0x4, scoped, tag = 'scoped memory for tile.38']
  %s0 = inlined_call_operand.vmem [shape: f32[4], index: 0, kind: input, shape index: {}]
  %s1 = inlined_call_operand.vmem [shape: f32[4,4], index: 1, kind: output, shape index: {}]
  // Predicated region
  $region2: #{tile.38} parent=0 // pred_check
    _
  $region3: #{tile.38} parent=0 // pred_check_branch
    %3 = sbr.rel (0) target = $region5
  $region4: #{tile.38} parent=0 // pred_region
    _
  $region5: #{tile.38} parent=0 // pred_fallthru
    _
  %v4 = vld [vmem:[%s0] ss:$0 sm:$0xff]
  %5 = vst [vmem:[%s1] sm:$0xf] %v4

// kernel: tile.3
$region0: #{tile.3}
  %s0 = inlined_call_operand.vmem [shape: f32[4,4], index: 0, kind: input, shape index: {}]
  %s1 = inlined_call_operand.vmem [shape: f32[16,1], index: 1, kind: output, shape index: {}]
  $region1: #{tile.3} parent=0
    #allocation0 [shape = 'u8[4096]{0}', space=vmem, size = 0x1000, scoped, tag = 'scoped mem for input reshape']
    %s3 = sshllo.u32 0, 4
    %v4 = vld [vmem:[%s0] sm:%s3]
    %5 = vst [vmem:[#allocation0] sm:%s3] %v4
    %v6 = vld [vmem:[#allocation0] sm:$0xf]
    %vm7 = vcmask 7168
    %8 = vst.msk [vmem:[%s1] ss:$4 sm:$0xf] %vm7, %v6
    %v9 = vld [vmem:[#allocation0] sm:$0xf]
    %10 = vrot.lane.b32.xlu0 %v9, 127
    %v11 = vpop.permute.xlu0 %10
    %vm12 = vcmask 7168
    %s13 = scalar_lea.vmem %s1, 1
    %14 = vst.msk [vmem:[%s13] ss:$4 sm:$0xf] %vm12, %v11
    %v15 = vld [vmem:[#allocation0] sm:$0xf]
    %16 = vrot.lane.b32.xlu0 %v15, 126
    %v17 = vpop.permute.xlu0 %16
    %vm18 = vcmask 7168
    %s19 = scalar_lea.vmem %s1, 2
    %20 = vst.msk [vmem:[%s19] ss:$4 sm:$0xf] %vm18, %v17
    %v21 = vld [vmem:[#allocation0] sm:$0xf]
    %22 = vrot.lane.b32.xlu0 %v21, 125
    %v23 = vpop.permute.xlu0 %22
    %vm24 = vcmask 7168
    %s25 = scalar_lea.vmem %s1, 3
    %26 = vst.msk [vmem:[%s25] ss:$4 sm:$0xf] %vm24, %v23

// kernel: pinn_forward.1
$region0: #{pinn_forward.1}
  #allocation0 [shape = 'u32[]', space=smem, size = 0x4, offset = 0x4, fixed_abs, tag = 'smem constant byte address 0x4 - core index']
  #allocation1 [shape = 'u32[144,128]{1,0:T(1,128)}', space=vmem, size = 0x12000, scoped, tag = 'internal scratch']
  %s0 = inlined_call_operand.vmem [shape: f32[32,256], index: 0, kind: input, shape index: {}]
  %s1 = inlined_call_operand.vmem [shape: bf16[128,32], index: 1, kind: input, shape index: {}]
  %s2 = inlined_call_operand.vmem [shape: bf16[128,128], index: 2, kind: input, shape index: {}]
  %s3 = inlined_call_operand.vmem [shape: bf16[128,128], index: 3, kind: input, shape index: {}]
  %s4 = inlined_call_operand.vmem [shape: bf16[16,128], index: 4, kind: input, shape index: {}]
  %s5 = inlined_call_operand.vmem [shape: f32[128,1], index: 5, kind: input, shape index: {}]
  %s6 = inlined_call_operand.vmem [shape: f32[128,1], index: 6, kind: input, shape index: {}]
  %s7 = inlined_call_operand.vmem [shape: f32[128,1], index: 7, kind: input, shape index: {}]
  %s8 = inlined_call_operand.vmem [shape: f32[16,1], index: 8, kind: input, shape index: {}]
  %s9 = inlined_call_operand.vmem [shape: f32[16,256], index: 9, kind: output, shape index: {}]
  %s10 = sld [smem:[#allocation0]]
  $region141: #{pinn_forward.1} parent=0
    _
  %s12 = ssub.s32 1, %s10
  %s13 = scalar_select 0, %s12, %s10
  $region1: #{pinn_forward.1} parent=0
    #allocation2 [shape = 'u8[32768]{0}', space=vmem, size = 0x8000, scoped, tag = 'input window, operand 0']
    #allocation3 [shape = 'u8[16384]{0}', space=vmem, size = 0x4000, scoped, tag = 'output window, operand 0']
    loop: start=0, step=1, limit=4
    $region2: #{pinn_forward.1} parent=1 // loop_pre_header
      _
    $region3: #{pinn_forward.1} parent=1 // loop_header
      %s15 = sphi 0, %s19
      %p16 = scmp.ge.s32.totalorder %s15, 4
      %s25 = sphi 0, %s27
      %s28 = sphi 0, %s25
      %s29 = sphi 0, %s28
      %s45 = sphi 0, %s29
      %s49 = sphi 0, %s49
      %s51 = sphi 0, %s49
      %s52 = sphi 0, %s51
      %s66 = sphi 0, %s52
      %s70 = sphi 0, %s70
      %s72 = sphi 0, %s70
      %s73 = sphi 0, %s72
      %s87 = sphi 0, %s73
      %s91 = sphi 0, %s91
      %s93 = sphi 0, %s91
      %s94 = sphi 0, %s93
      %s108 = sphi 0, %s94
      %s112 = sphi 0, %s112
      %s114 = sphi 0, %s112
      %s115 = sphi 0, %s114
      %s129 = sphi 0, %s115
      %s133 = sphi 0, %s133
      %s135 = sphi 0, %s133
      %s136 = sphi 0, %s135
      %s150 = sphi 0, %s136
      %s154 = sphi 0, %s154
      %s156 = sphi 0, %s154
      %s157 = sphi 0, %s156
      %s171 = sphi 0, %s157
      %s175 = sphi 0, %s175
      %s177 = sphi 0, %s175
      %s178 = sphi 0, %s177
      %s192 = sphi 0, %s178
      %s196 = sphi 0, %s196
      %s198 = sphi 0, %s196
      %s199 = sphi 0, %s198
      %s213 = sphi 0, %s199
      %s219 = sphi 0, %s221
      %s222 = sphi 0, %s219
      %s223 = sphi 0, %s222
      %s239 = sphi 0, %s223
    $region4: #{pinn_forward.1} parent=1 // loop_header_branch
      %18 = sbr.rel (%p16) target = $region8
    $region5: #{pinn_forward.1} parent=1 // loop_body
      %s20 = ssub.s32 %s15, 1
      %s21 = ssub.s32 %s15, 2
      %s22 = sadd.s32 %s15, 1
      %s23 = ssub.s32 %s15, %s22
      %p24 = scmp.eq.s32.totalorder %s23, 0
      %s26 = sadd.s32 %s25, 1
      %s27 = scalar_select %p24, %s25, %s26
      %p30 = pneg %p24
      %p31 = scmp.eq.s32.totalorder %s15, 1
      %p32 = por %p30, %p31
      %p33 = scmp.ne.s32.totalorder %s25, %s28
      %p34 = scmp.eq.s32.totalorder %s15, 0
      %p35 = por %p33, %p34
      %p36 = scmp.ne.s32.totalorder %s25, %s28
      %p37 = scmp.eq.s32.totalorder %s20, 1
      %p38 = por %p36, %p37
      %p39 = scmp.ne.s32.totalorder %s28, %s29
      %p40 = scmp.eq.s32.totalorder %s20, 0
      %p41 = por %p39, %p40
      %p42 = scmp.ne.s32.totalorder %s28, %s29
      %p43 = scmp.eq.s32.totalorder %s21, 1
      %p44 = por %p42, %p43
      %p46 = scmp.ne.s32.totalorder %s29, %s45
      %p47 = scmp.eq.s32.totalorder %s21, 0
      %p48 = por %p46, %p47
      %s50 = sadd.s32 %s49, 1
      %p53 = scmp.eq.s32.totalorder %s15, 1
      %p54 = scmp.ne.s32.totalorder %s49, %s51
      %p55 = scmp.eq.s32.totalorder %s15, 0
      %p56 = por %p54, %p55
      %p57 = scmp.ne.s32.totalorder %s49, %s51
      %p58 = scmp.eq.s32.totalorder %s20, 1
      %p59 = por %p57, %p58
      %p60 = scmp.ne.s32.totalorder %s51, %s52
      %p61 = scmp.eq.s32.totalorder %s20, 0
      %p62 = por %p60, %p61
      %p63 = scmp.ne.s32.totalorder %s51, %s52
      %p64 = scmp.eq.s32.totalorder %s21, 1
      %p65 = por %p63, %p64
      %p67 = scmp.ne.s32.totalorder %s52, %s66
      %p68 = scmp.eq.s32.totalorder %s21, 0
      %p69 = por %p67, %p68
      %s71 = sadd.s32 %s70, 1
      %p74 = scmp.eq.s32.totalorder %s15, 1
      %p75 = scmp.ne.s32.totalorder %s70, %s72
      %p76 = scmp.eq.s32.totalorder %s15, 0
      %p77 = por %p75, %p76
      %p78 = scmp.ne.s32.totalorder %s70, %s72
      %p79 = scmp.eq.s32.totalorder %s20, 1
      %p80 = por %p78, %p79
      %p81 = scmp.ne.s32.totalorder %s72, %s73
      %p82 = scmp.eq.s32.totalorder %s20, 0
      %p83 = por %p81, %p82
      %p84 = scmp.ne.s32.totalorder %s72, %s73
      %p85 = scmp.eq.s32.totalorder %s21, 1
      %p86 = por %p84, %p85
      %p88 = scmp.ne.s32.totalorder %s73, %s87
      %p89 = scmp.eq.s32.totalorder %s21, 0
      %p90 = por %p88, %p89
      %s92 = sadd.s32 %s91, 1
      %p95 = scmp.eq.s32.totalorder %s15, 1
      %p96 = scmp.ne.s32.totalorder %s91, %s93
      %p97 = scmp.eq.s32.totalorder %s15, 0
      %p98 = por %p96, %p97
      %p99 = scmp.ne.s32.totalorder %s91, %s93
      %p100 = scmp.eq.s32.totalorder %s20, 1
      %p101 = por %p99, %p100
      %p102 = scmp.ne.s32.totalorder %s93, %s94
      %p103 = scmp.eq.s32.totalorder %s20, 0
      %p104 = por %p102, %p103
      %p105 = scmp.ne.s32.totalorder %s93, %s94
      %p106 = scmp.eq.s32.totalorder %s21, 1
      %p107 = por %p105, %p106
      %p109 = scmp.ne.s32.totalorder %s94, %s108
      %p110 = scmp.eq.s32.totalorder %s21, 0
      %p111 = por %p109, %p110
      %s113 = sadd.s32 %s112, 1
      %p116 = scmp.eq.s32.totalorder %s15, 1
      %p117 = scmp.ne.s32.totalorder %s112, %s114
      %p118 = scmp.eq.s32.totalorder %s15, 0
      %p119 = por %p117, %p118
      %p120 = scmp.ne.s32.totalorder %s112, %s114
      %p121 = scmp.eq.s32.totalorder %s20, 1
      %p122 = por %p120, %p121
      %p123 = scmp.ne.s32.totalorder %s114, %s115
      %p124 = scmp.eq.s32.totalorder %s20, 0
      %p125 = por %p123, %p124
      %p126 = scmp.ne.s32.totalorder %s114, %s115
      %p127 = scmp.eq.s32.totalorder %s21, 1
      %p128 = por %p126, %p127
      %p130 = scmp.ne.s32.totalorder %s115, %s129
      %p131 = scmp.eq.s32.totalorder %s21, 0
      %p132 = por %p130, %p131
      %s134 = sadd.s32 %s133, 1
      %p137 = scmp.eq.s32.totalorder %s15, 1
      %p138 = scmp.ne.s32.totalorder %s133, %s135
      %p139 = scmp.eq.s32.totalorder %s15, 0
      %p140 = por %p138, %p139
      %p141 = scmp.ne.s32.totalorder %s133, %s135
      %p142 = scmp.eq.s32.totalorder %s20, 1
      %p143 = por %p141, %p142
      %p144 = scmp.ne.s32.totalorder %s135, %s136
      %p145 = scmp.eq.s32.totalorder %s20, 0
      %p146 = por %p144, %p145
      %p147 = scmp.ne.s32.totalorder %s135, %s136
      %p148 = scmp.eq.s32.totalorder %s21, 1
      %p149 = por %p147, %p148
      %p151 = scmp.ne.s32.totalorder %s136, %s150
      %p152 = scmp.eq.s32.totalorder %s21, 0
      %p153 = por %p151, %p152
      %s155 = sadd.s32 %s154, 1
      %p158 = scmp.eq.s32.totalorder %s15, 1
      %p159 = scmp.ne.s32.totalorder %s154, %s156
      %p160 = scmp.eq.s32.totalorder %s15, 0
      %p161 = por %p159, %p160
      %p162 = scmp.ne.s32.totalorder %s154, %s156
      %p163 = scmp.eq.s32.totalorder %s20, 1
      %p164 = por %p162, %p163
      %p165 = scmp.ne.s32.totalorder %s156, %s157
      %p166 = scmp.eq.s32.totalorder %s20, 0
      %p167 = por %p165, %p166
      %p168 = scmp.ne.s32.totalorder %s156, %s157
      %p169 = scmp.eq.s32.totalorder %s21, 1
      %p170 = por %p168, %p169
      %p172 = scmp.ne.s32.totalorder %s157, %s171
      %p173 = scmp.eq.s32.totalorder %s21, 0
      %p174 = por %p172, %p173
      %s176 = sadd.s32 %s175, 1
      %p179 = scmp.eq.s32.totalorder %s15, 1
      %p180 = scmp.ne.s32.totalorder %s175, %s177
      %p181 = scmp.eq.s32.totalorder %s15, 0
      %p182 = por %p180, %p181
      %p183 = scmp.ne.s32.totalorder %s175, %s177
      %p184 = scmp.eq.s32.totalorder %s20, 1
      %p185 = por %p183, %p184
      %p186 = scmp.ne.s32.totalorder %s177, %s178
      %p187 = scmp.eq.s32.totalorder %s20, 0
      %p188 = por %p186, %p187
      %p189 = scmp.ne.s32.totalorder %s177, %s178
      %p190 = scmp.eq.s32.totalorder %s21, 1
      %p191 = por %p189, %p190
      %p193 = scmp.ne.s32.totalorder %s178, %s192
      %p194 = scmp.eq.s32.totalorder %s21, 0
      %p195 = por %p193, %p194
      %s197 = sadd.s32 %s196, 1
      %p200 = scmp.eq.s32.totalorder %s15, 1
      %p201 = scmp.ne.s32.totalorder %s196, %s198
      %p202 = scmp.eq.s32.totalorder %s15, 0
      %p203 = por %p201, %p202
      %p204 = scmp.ne.s32.totalorder %s196, %s198
      %p205 = scmp.eq.s32.totalorder %s20, 1
      %p206 = por %p204, %p205
      %p207 = scmp.ne.s32.totalorder %s198, %s199
      %p208 = scmp.eq.s32.totalorder %s20, 0
      %p209 = por %p207, %p208
      %p210 = scmp.ne.s32.totalorder %s198, %s199
      %p211 = scmp.eq.s32.totalorder %s21, 1
      %p212 = por %p210, %p211
      %p214 = scmp.ne.s32.totalorder %s199, %s213
      %p215 = scmp.eq.s32.totalorder %s21, 0
      %p216 = por %p214, %p215
      %s217 = ssub.s32 %s15, %s22
      %p218 = scmp.eq.s32.totalorder %s217, 0
      %s220 = sadd.s32 %s219, 1
      %s221 = scalar_select %p218, %s219, %s220
      %p224 = pneg %p218
      %p225 = scmp.eq.s32.totalorder %s15, 1
      %p226 = por %p224, %p225
      %p227 = scmp.ne.s32.totalorder %s219, %s222
      %p228 = scmp.eq.s32.totalorder %s15, 0
      %p229 = por %p227, %p228
      %p230 = scmp.ne.s32.totalorder %s219, %s222
      %p231 = scmp.eq.s32.totalorder %s20, 1
      %p232 = por %p230, %p231
      %p233 = scmp.ne.s32.totalorder %s222, %s223
      %p234 = scmp.eq.s32.totalorder %s20, 0
      %p235 = por %p233, %p234
      %p236 = scmp.ne.s32.totalorder %s222, %s223
      %p237 = scmp.eq.s32.totalorder %s21, 1
      %p238 = por %p236, %p237
      %p240 = scmp.ne.s32.totalorder %s223, %s239
      %p241 = scmp.eq.s32.totalorder %s21, 0
      %p242 = por %p240, %p241
      %p243 = scmp.le.s32.totalorder 1, %s15
      %p244 = scmp.lt.s32.totalorder %s15, 3
      %p245 = pnand %p243, %p244
      %p246 = pneg %p245
      // Predicated region
      $region9: #{pinn_forward.1} parent=5 // pred_check
        _
      $region10: #{pinn_forward.1} parent=5 // pred_check_branch
        %248 = sbr.rel (%p245) target = $region12
      $region11: #{pinn_forward.1} parent=5 // pred_region
        %s249 = ssub.s32 %s15, 1
        // Predicated region
        $region13: #{pinn_forward.1} parent=11 // pred_check
          %p250 = pneg %p62
        $region14: #{pinn_forward.1} parent=11 // pred_check_branch
          %252 = sbr.rel (%p250) target = $region16
        $region15: #{pinn_forward.1} parent=11 // pred_region
          _
        $region16: #{pinn_forward.1} parent=11 // pred_fallthru
          _
        // Predicated region
        $region17: #{pinn_forward.1} parent=11 // pred_check
          %p253 = pneg %p83
        $region18: #{pinn_forward.1} parent=11 // pred_check_branch
          %255 = sbr.rel (%p253) target = $region20
        $region19: #{pinn_forward.1} parent=11 // pred_region
          _
        $region20: #{pinn_forward.1} parent=11 // pred_fallthru
          _
        // Predicated region
        $region21: #{pinn_forward.1} parent=11 // pred_check
          %p256 = pneg %p104
        $region22: #{pinn_forward.1} parent=11 // pred_check_branch
          %258 = sbr.rel (%p256) target = $region24
        $region23: #{pinn_forward.1} parent=11 // pred_region
          _
        $region24: #{pinn_forward.1} parent=11 // pred_fallthru
          _
        // Predicated region
        $region25: #{pinn_forward.1} parent=11 // pred_check
          %p259 = pneg %p125
        $region26: #{pinn_forward.1} parent=11 // pred_check_branch
          %261 = sbr.rel (%p259) target = $region28
        $region27: #{pinn_forward.1} parent=11 // pred_region
          _
        $region28: #{pinn_forward.1} parent=11 // pred_fallthru
          _
        // Predicated region
        $region29: #{pinn_forward.1} parent=11 // pred_check
          %p262 = pneg %p146
        $region30: #{pinn_forward.1} parent=11 // pred_check_branch
          %264 = sbr.rel (%p262) target = $region32
        $region31: #{pinn_forward.1} parent=11 // pred_region
          _
        $region32: #{pinn_forward.1} parent=11 // pred_fallthru
          _
        // Predicated region
        $region33: #{pinn_forward.1} parent=11 // pred_check
          %p265 = pneg %p167
        $region34: #{pinn_forward.1} parent=11 // pred_check_branch
          %267 = sbr.rel (%p265) target = $region36
        $region35: #{pinn_forward.1} parent=11 // pred_region
          _
        $region36: #{pinn_forward.1} parent=11 // pred_fallthru
          _
        // Predicated region
        $region37: #{pinn_forward.1} parent=11 // pred_check
          %p268 = pneg %p188
        $region38: #{pinn_forward.1} parent=11 // pred_check_branch
          %270 = sbr.rel (%p268) target = $region40
        $region39: #{pinn_forward.1} parent=11 // pred_region
          _
        $region40: #{pinn_forward.1} parent=11 // pred_fallthru
          _
        // Predicated region
        $region41: #{pinn_forward.1} parent=11 // pred_check
          %p271 = pneg %p209
        $region42: #{pinn_forward.1} parent=11 // pred_check_branch
          %273 = sbr.rel (%p271) target = $region44
        $region43: #{pinn_forward.1} parent=11 // pred_region
          _
        $region44: #{pinn_forward.1} parent=11 // pred_fallthru
          _
      $region12: #{pinn_forward.1} parent=5 // pred_fallthru
        _
      %p274 = scmp.lt.s32.totalorder %s15, 2
      // Predicated region
      $region45: #{pinn_forward.1} parent=5 // pred_check
        %p275 = pneg %p274
      $region46: #{pinn_forward.1} parent=5 // pred_check_branch
        %277 = sbr.rel (%p275) target = $region48
      $region47: #{pinn_forward.1} parent=5 // pred_region
        // Predicated region
        $region49: #{pinn_forward.1} parent=47 // pred_check
          %p278 = pneg %p35
        $region50: #{pinn_forward.1} parent=47 // pred_check_branch
          %280 = sbr.rel (%p278) target = $region52
        $region51: #{pinn_forward.1} parent=47 // pred_region
          %s281 = sand.u32 %s25, 1
          %s282 = sand.u32 %s25, 1
          %s283 = smul.addr %s282, 32
          %s284 = scalar_lea.vmem [#allocation2], %s283
          %s285 = smul.addr %s15, 8
          %s286 = scalar_lea.vmem %s0, %s285
          // Predicated region
          $region53: #{pinn_forward.1} parent=51 // pred_check
            _
          $region54: #{pinn_forward.1} parent=51 // pred_check_branch
            %288 = sbr.rel (0) target = $region56
          $region55: #{pinn_forward.1} parent=51 // pred_region
            // Predicated region
            $region57: #{pinn_forward.1} parent=55 // pred_check
              _
            $region58: #{pinn_forward.1} parent=55 // pred_check_branch
              %290 = sbr.rel (0) target = $region60
            $region59: #{pinn_forward.1} parent=55 // pred_region
              // Predicated region
              $region72: #{pinn_forward.1} parent=59 // pred_check
                _
              $region73: #{pinn_forward.1} parent=59 // pred_check_branch
                %311 = sbr.rel (0) target = $region75
              $region74: #{pinn_forward.1} parent=59 // pred_region
                loop: start=0, step=1, limit=1
                $region76: #{pinn_forward.1} parent=74 // loop_pre_header
                  _
                $region77: #{pinn_forward.1} parent=74 // loop_header
                  %s313 = sphi 0, %s317
                  %p314 = scmp.ge.s32.totalorder %s313, 1
                  %s318 = sphi %s286, %s286
                  %s319 = sphi %s284, %s284
                $region78: #{pinn_forward.1} parent=74 // loop_header_branch
                  %316 = sbr.rel (%p314) target = $region82
                $region79: #{pinn_forward.1} parent=74 // loop_body
                  %v320 = vld [vmem:[%s318] sm:$0xff]
                  %321 = vst [vmem:[%s319] sm:$0xff] %v320
                  %v322 = vld [vmem:[%s318 + $0x10] sm:$0xff]
                  %323 = vst [vmem:[%s319 + $0x8] sm:$0xff] %v322
                  %v324 = vld [vmem:[%s318 + $0x20] sm:$0xff]
                  %325 = vst [vmem:[%s319 + $0x10] sm:$0xff] %v324
                  %v326 = vld [vmem:[%s318 + $0x30] sm:$0xff]
                  %327 = vst [vmem:[%s319 + $0x18] sm:$0xff] %v326
                $region80: #{pinn_forward.1} parent=74 // loop_footer
                  %s317 = sadd.s32 1, %s313
                $region81: #{pinn_forward.1} parent=74 // loop_footer_branch
                  %312 = sbr.rel target = $region77
                $region82: #{pinn_forward.1} parent=74 // loop_exit
                  _
              $region75: #{pinn_forward.1} parent=59 // pred_fallthru
                _
              // Predicated region
              $region83: #{pinn_forward.1} parent=59 // pred_check
                _
              $region84: #{pinn_forward.1} parent=59 // pred_check_branch
                %329 = sbr.rel target = $region86
              $region85: #{pinn_forward.1} parent=59 // pred_region
                _
              $region86: #{pinn_forward.1} parent=59 // pred_fallthru
                _
            $region60: #{pinn_forward.1} parent=55 // pred_fallthru
              _
            // Predicated region
            $region61: #{pinn_forward.1} parent=55 // pred_check
              _
            $region62: #{pinn_forward.1} parent=55 // pred_check_branch
              %292 = sbr.rel target = $region64
            $region63: #{pinn_forward.1} parent=55 // pred_region
              loop: start=0, step=1, limit=1
              $region65: #{pinn_forward.1} parent=63 // loop_pre_header
                _
              $region66: #{pinn_forward.1} parent=63 // loop_header
                %s295 = sphi 0, %s299
                %p296 = scmp.ge.s32.totalorder %s295, 1
                %s300 = sphi %s286, %s286
                %s301 = sphi %s284, %s284
              $region67: #{pinn_forward.1} parent=63 // loop_header_branch
                %298 = sbr.rel (%p296) target = $region71
              $region68: #{pinn_forward.1} parent=63 // loop_body
                %v302 = vld [vmem:[%s300] sm:$0xff]
                %303 = vst [vmem:[%s301] sm:$0xff] %v302
                %v304 = vld [vmem:[%s300 + $0x10] sm:$0xff]
                %305 = vst [vmem:[%s301 + $0x8] sm:$0xff] %v304
                %v306 = vld [vmem:[%s300 + $0x20] sm:$0xff]
                %307 = vst [vmem:[%s301 + $0x10] sm:$0xff] %v306
                %v308 = vld [vmem:[%s300 + $0x30] sm:$0xff]
                %309 = vst [vmem:[%s301 + $0x18] sm:$0xff] %v308
              $region69: #{pinn_forward.1} parent=63 // loop_footer
                %s299 = sadd.s32 1, %s295
              $region70: #{pinn_forward.1} parent=63 // loop_footer_branch
                %294 = sbr.rel target = $region66
              $region71: #{pinn_forward.1} parent=63 // loop_exit
                _
            $region64: #{pinn_forward.1} parent=55 // pred_fallthru
              _
          $region56: #{pinn_forward.1} parent=51 // pred_fallthru
            _
          %330 = vnop
        $region52: #{pinn_forward.1} parent=47 // pred_fallthru
          _
      $region48: #{pinn_forward.1} parent=5 // pred_fallthru
        _
      %p331 = scmp.le.s32.totalorder 1, %s15
      %p332 = scmp.lt.s32.totalorder %s15, 3
      %p333 = pnand %p331, %p332
      %p334 = pneg %p333
      // Predicated region
      $region87: #{pinn_forward.1} parent=5 // pred_check
        _
      $region88: #{pinn_forward.1} parent=5 // pred_check_branch
        %336 = sbr.rel (%p333) target = $region90
      $region89: #{pinn_forward.1} parent=5 // pred_region
        %s337 = ssub.s32 %s15, 1
        %s338 = sand.u32 %s28, 1
        %s339 = sand.u32 %s28, 1
        %s340 = smul.addr %s339, 32
        %s341 = scalar_lea.vmem [#allocation2], %s340
        // Predicated region
        $region91: #{pinn_forward.1} parent=89 // pred_check
          %p342 = pneg %p41
        $region92: #{pinn_forward.1} parent=89 // pred_check_branch
          %344 = sbr.rel (%p342) target = $region94
        $region93: #{pinn_forward.1} parent=89 // pred_region
          _
        $region94: #{pinn_forward.1} parent=89 // pred_fallthru
          _
        %s345 = sand.u32 %s28, 1
        %s346 = sand.u32 %s28, 1
        %s347 = smul.addr %s346, 32
        %s348 = scalar_lea.vmem [#allocation2], %s347
        %p349 = pneg %p41
        %p350 = pneg %p38
        %p351 = pneg %p62
        %p352 = pneg %p59
        %p353 = pneg %p83
        %p354 = pneg %p80
        %p355 = pneg %p104
        %p356 = pneg %p101
        %p357 = pneg %p125
        %p358 = pneg %p122
        %p359 = pneg %p146
        %p360 = pneg %p143
        %p361 = pneg %p167
        %p362 = pneg %p164
        %p363 = pneg %p188
        %p364 = pneg %p185
        %p365 = pneg %p209
        %p366 = pneg %p206
        %p367 = pneg %p235
        %p368 = pneg %p232
        %s369 = sand.u32 %s222, 1
        %s370 = sand.u32 %s222, 1
        %s371 = smul.addr %s370, 16
        %s372 = scalar_lea.vmem [#allocation3], %s371
        %v374 = vld [vmem:[%s341] sm:$0xff]
        %v375 = vld [vmem:[%s341 + $0x8] sm:$0xff]
        %v376 = vld [vmem:[%s341 + $0x10] sm:$0xff]
        %v377 = vld [vmem:[%s341 + $0x18] sm:$0xff]
        %v378 = vld [vmem:[%s1] sm:$0xf]
        %v379 = vld [vmem:[%s1 + $0x4] sm:$0xf]
        %v380 = vld [vmem:[%s1 + $0x8] sm:$0xf]
        %v381 = vld [vmem:[%s1 + $0xc] sm:$0xf]
        %v382 = vld [vmem:[%s1 + $0x10] sm:$0xf]
        %v383 = vld [vmem:[%s1 + $0x14] sm:$0xf]
        %v384 = vld [vmem:[%s1 + $0x18] sm:$0xf]
        %v385 = vld [vmem:[%s1 + $0x1c] sm:$0xf]
        %v386 = vld [vmem:[%s1 + $0x20] sm:$0xf]
        %v387 = vld [vmem:[%s1 + $0x24] sm:$0xf]
        %v388 = vld [vmem:[%s1 + $0x28] sm:$0xf]
        %v389 = vld [vmem:[%s1 + $0x2c] sm:$0xf]
        %v390 = vld [vmem:[%s1 + $0x30] sm:$0xf]
        %v391 = vld [vmem:[%s1 + $0x34] sm:$0xf]
        %v392 = vld [vmem:[%s1 + $0x38] sm:$0xf]
        %v393 = vld [vmem:[%s1 + $0x3c] sm:$0xf]
        %v394 = vpack.c.bf16 %v375, %v374
        %v395 = vpack.c.bf16 %v377, %v376
        %v396 = vld [vmem:[%s5] sm:$0xff]
        %v397 = vld [vmem:[%s5 + $0x8] sm:$0xff]
        %v398 = vld [vmem:[%s5 + $0x10] sm:$0xff]
        %v399 = vld [vmem:[%s5 + $0x18] sm:$0xff]
        %v400 = vld [vmem:[%s5 + $0x20] sm:$0xff]
        %v401 = vld [vmem:[%s5 + $0x28] sm:$0xff]
        %v402 = vld [vmem:[%s5 + $0x30] sm:$0xff]
        %v403 = vld [vmem:[%s5 + $0x38] sm:$0xff]
        %v404 = vld [vmem:[%s5 + $0x40] sm:$0xff]
        %v405 = vld [vmem:[%s5 + $0x48] sm:$0xff]
        %v406 = vld [vmem:[%s5 + $0x50] sm:$0xff]
        %v407 = vld [vmem:[%s5 + $0x58] sm:$0xff]
        %v408 = vld [vmem:[%s5 + $0x60] sm:$0xff]
        %v409 = vld [vmem:[%s5 + $0x68] sm:$0xff]
        %v410 = vld [vmem:[%s5 + $0x70] sm:$0xff]
        %v411 = vld [vmem:[%s5 + $0x78] sm:$0xff]
        %413 = vset.pattern.permute.xlu0 0
        %414 = vperm.xlu0 %413, %v396
        %v415 = vpop.permute.xlu0 %414
        %418 = vset.pattern.permute.xlu0 0
        %419 = vperm.xlu0 %418, %v397
        %v420 = vpop.permute.xlu0 %419
        %423 = vset.pattern.permute.xlu0 0
        %424 = vperm.xlu0 %423, %v398
        %v425 = vpop.permute.xlu0 %424
        %428 = vset.pattern.permute.xlu0 0
        %429 = vperm.xlu0 %428, %v399
        %v430 = vpop.permute.xlu0 %429
        %433 = vset.pattern.permute.xlu0 0
        %434 = vperm.xlu0 %433, %v400
        %v435 = vpop.permute.xlu0 %434
        %438 = vset.pattern.permute.xlu0 0
        %439 = vperm.xlu0 %438, %v401
        %v440 = vpop.permute.xlu0 %439
        %443 = vset.pattern.permute.xlu0 0
        %444 = vperm.xlu0 %443, %v402
        %v445 = vpop.permute.xlu0 %444
        %448 = vset.pattern.permute.xlu0 0
        %449 = vperm.xlu0 %448, %v403
        %v450 = vpop.permute.xlu0 %449
        %453 = vset.pattern.permute.xlu0 0
        %454 = vperm.xlu0 %453, %v404
        %v455 = vpop.permute.xlu0 %454
        %458 = vset.pattern.permute.xlu0 0
        %459 = vperm.xlu0 %458, %v405
        %v460 = vpop.permute.xlu0 %459
        %463 = vset.pattern.permute.xlu0 0
        %464 = vperm.xlu0 %463, %v406
        %v465 = vpop.permute.xlu0 %464
        %468 = vset.pattern.permute.xlu0 0
        %469 = vperm.xlu0 %468, %v407
        %v470 = vpop.permute.xlu0 %469
        %473 = vset.pattern.permute.xlu0 0
        %474 = vperm.xlu0 %473, %v408
        %v475 = vpop.permute.xlu0 %474
        %478 = vset.pattern.permute.xlu0 0
        %479 = vperm.xlu0 %478, %v409
        %v480 = vpop.permute.xlu0 %479
        %483 = vset.pattern.permute.xlu0 0
        %484 = vperm.xlu0 %483, %v410
        %v485 = vpop.permute.xlu0 %484
        %488 = vset.pattern.permute.xlu0 0
        %489 = vperm.xlu0 %488, %v411
        %v490 = vpop.permute.xlu0 %489
        %v508 = vunpack.c.l.b16 %v378
        %v509 = vunpack.c.l.b16 %v379
        %v510 = vunpack.c.l.b16 %v380
        %v511 = vunpack.c.l.b16 %v381
        %v512 = vunpack.c.l.b16 %v382
        %v513 = vunpack.c.l.b16 %v383
        %v514 = vunpack.c.l.b16 %v384
        %v515 = vunpack.c.l.b16 %v385
        %v516 = vunpack.c.l.b16 %v386
        %v517 = vunpack.c.l.b16 %v387
        %v518 = vunpack.c.l.b16 %v388
        %v519 = vunpack.c.l.b16 %v389
        %v520 = vunpack.c.l.b16 %v390
        %v521 = vunpack.c.l.b16 %v391
        %v522 = vunpack.c.l.b16 %v392
        %v523 = vunpack.c.l.b16 %v393
        %v524 = vpack.c.b16 %v509, %v508
        %v525 = vpack.c.b16 %v511, %v510
        %v526 = vpack.c.b16 %v513, %v512
        %v527 = vpack.c.b16 %v515, %v514
        %v528 = vpack.c.b16 %v517, %v516
        %v529 = vpack.c.b16 %v519, %v518
        %v530 = vpack.c.b16 %v521, %v520
        %v531 = vpack.c.b16 %v523, %v522
        %vm532 = vcmask 261120
        %v534 = vsel %vm532, %v524, 0
        %v537 = vsel %vm532, %v525, 0
        %v540 = vsel %vm532, %v526, 0
        %v543 = vsel %vm532, %v527, 0
        %v546 = vsel %vm532, %v528, 0
        %v549 = vsel %vm532, %v529, 0
        %v552 = vsel %vm532, %v530, 0
        %v555 = vsel %vm532, %v531, 0
        %557 = vmatprep.subr.bf16.mxu0 0
        %558 = vmatpush1.bf16.msra.mxu0 %v394
        %559 = vmatprep.subr.bf16.mxu0 0
        %560 = vmatpush1.bf16.msra.mxu0 %v395
        %561 = vmatprep.subr.bf16.mxu0 0
        %562 = vmatpush1.bf16.msra.mxu0 0
        %563 = vmatprep.subr.bf16.mxu0 0
        %564 = vmatpush1.bf16.msra.mxu0 0
        %565 = vmatprep.subr.bf16.mxu0 0
        %566 = vmatpush1.bf16.msra.mxu0 0
        %567 = vmatprep.subr.bf16.mxu0 0
        %568 = vmatpush1.bf16.msra.mxu0 0
        %569 = vmatprep.subr.bf16.mxu0 0
        %570 = vmatpush1.bf16.msra.mxu0 0
        %571 = vmatprep.subr.bf16.mxu0 0
        %572 = vmatpush1.bf16.msra.mxu0 0
        %573 = vmatprep.subr.bf16.mxu0 0
        %574 = vmatpush1.bf16.msra.mxu0 0
        %575 = vmatprep.subr.bf16.mxu0 0
        %576 = vmatpush1.bf16.msra.mxu0 0
        %577 = vmatprep.subr.bf16.mxu0 0
        %578 = vmatpush1.bf16.msra.mxu0 0
        %579 = vmatprep.subr.bf16.mxu0 0
        %580 = vmatpush1.bf16.msra.mxu0 0
        %581 = vmatprep.subr.bf16.mxu0 0
        %582 = vmatpush1.bf16.msra.mxu0 0
        %583 = vmatprep.subr.bf16.mxu0 0
        %584 = vmatpush1.bf16.msra.mxu0 0
        %585 = vmatprep.subr.bf16.mxu0 0
        %586 = vmatpush1.bf16.msra.mxu0 0
        %587 = vmatprep.subr.bf16.mxu0 0
        %588 = vmatpush1.bf16.msra.mxu0 0
        %589 = vmatprep.mubr.bf16.mxu0 0
        %590 = vmatmul.mubr.bf16.gmra.mrb[0].mxu0 %v534
        %v591 = vpop.f32.mrb[0].mxu0
        %v592 = vadd.f32 %v415, %v591
        %v593 = vpop.f32.mrb[0].mxu0
        %v594 = vpop.f32.mrb[0].mxu0
        %v595 = vadd.f32 %v420, %v594
        %v596 = vpop.f32.mrb[0].mxu0
        %597 = vmatprep.mubr.bf16.mxu0 0
        %598 = vmatmul.mubr.bf16.gmra.mrb[0].mxu0 %v537
        %v599 = vpop.f32.mrb[0].mxu0
        %v600 = vadd.f32 %v425, %v599
        %v601 = vpop.f32.mrb[0].mxu0
        %v602 = vpop.f32.mrb[0].mxu0
        %v603 = vadd.f32 %v430, %v602
        %v604 = vpop.f32.mrb[0].mxu0
        %605 = vmatprep.mubr.bf16.mxu0 0
        %606 = vmatmul.mubr.bf16.gmra.mrb[0].mxu0 %v540
        %v607 = vpop.f32.mrb[0].mxu0
        %v608 = vadd.f32 %v435, %v607
        %v609 = vpop.f32.mrb[0].mxu0
        %v610 = vpop.f32.mrb[0].mxu0
        %v611 = vadd.f32 %v440, %v610
        %v612 = vpop.f32.mrb[0].mxu0
        %613 = vmatprep.mubr.bf16.mxu0 0
        %614 = vmatmul.mubr.bf16.gmra.mrb[0].mxu0 %v543
        %v615 = vpop.f32.mrb[0].mxu0
        %v616 = vadd.f32 %v445, %v615
        %v617 = vpop.f32.mrb[0].mxu0
        %v618 = vpop.f32.mrb[0].mxu0
        %v619 = vadd.f32 %v450, %v618
        %v620 = vpop.f32.mrb[0].mxu0
        %621 = vmatprep.mubr.bf16.mxu0 0
        %622 = vmatmul.mubr.bf16.gmra.mrb[0].mxu0 %v546
        %v623 = vpop.f32.mrb[0].mxu0
        %v624 = vadd.f32 %v455, %v623
        %v625 = vpop.f32.mrb[0].mxu0
        %v626 = vpop.f32.mrb[0].mxu0
        %v627 = vadd.f32 %v460, %v626
        %v628 = vpop.f32.mrb[0].mxu0
        %629 = vmatprep.mubr.bf16.mxu0 0
        %630 = vmatmul.mubr.bf16.gmra.mrb[0].mxu0 %v549
        %v631 = vpop.f32.mrb[0].mxu0
        %v632 = vadd.f32 %v465, %v631
        %v633 = vpop.f32.mrb[0].mxu0
        %v634 = vpop.f32.mrb[0].mxu0
        %v635 = vadd.f32 %v470, %v634
        %v636 = vpop.f32.mrb[0].mxu0
        %637 = vmatprep.mubr.bf16.mxu0 0
        %638 = vmatmul.mubr.bf16.gmra.mrb[0].mxu0 %v552
        %v639 = vpop.f32.mrb[0].mxu0
        %v640 = vadd.f32 %v475, %v639
        %v641 = vpop.f32.mrb[0].mxu0
        %v642 = vpop.f32.mrb[0].mxu0
        %v643 = vadd.f32 %v480, %v642
        %v644 = vpop.f32.mrb[0].mxu0
        %645 = vmatprep.mubr.bf16.mxu0 0
        %646 = vmatmul.mubr.bf16.gmra.mrb[0].mxu0 %v555
        %v647 = vpop.f32.mrb[0].mxu0
        %v648 = vadd.f32 %v485, %v647
        %v649 = vpop.f32.mrb[0].mxu0
        %v650 = vpop.f32.mrb[0].mxu0
        %v651 = vadd.f32 %v490, %v650
        %v652 = vpop.f32.mrb[0].mxu0
        %653 = vdwg.mxu0
        %v654 = vxor.u32 %v592, 2147483648
        %v655 = vxor.u32 %v595, 2147483648
        %v656 = vxor.u32 %v600, 2147483648
        %v657 = vxor.u32 %v603, 2147483648
        %v658 = vxor.u32 %v608, 2147483648
        %v659 = vxor.u32 %v611, 2147483648
        %v660 = vxor.u32 %v616, 2147483648
        %v661 = vxor.u32 %v619, 2147483648
        %v662 = vxor.u32 %v624, 2147483648
        %v663 = vxor.u32 %v627, 2147483648
        %v664 = vxor.u32 %v632, 2147483648
        %v665 = vxor.u32 %v635, 2147483648
        %v666 = vxor.u32 %v640, 2147483648
        %v667 = vxor.u32 %v643, 2147483648
        %v668 = vxor.u32 %v648, 2147483648
        %v669 = vxor.u32 %v651, 2147483648
        %v670 = vmul.f32 %v654, 1.442695
        %v671 = vpow.pop %v670
        %v672 = vmul.f32 %v655, 1.442695
        %v673 = vpow.pop %v672
        %v674 = vmul.f32 %v656, 1.442695
        %v675 = vpow.pop %v674
        %v676 = vmul.f32 %v657, 1.442695
        %v677 = vpow.pop %v676
        %v678 = vmul.f32 %v658, 1.442695
        %v679 = vpow.pop %v678
        %v680 = vmul.f32 %v659, 1.442695
        %v681 = vpow.pop %v680
        %v682 = vmul.f32 %v660, 1.442695
        %v683 = vpow.pop %v682
        %v684 = vmul.f32 %v661, 1.442695
        %v685 = vpow.pop %v684
        %v686 = vmul.f32 %v662, 1.442695
        %v687 = vpow.pop %v686
        %v688 = vmul.f32 %v663, 1.442695
        %v689 = vpow.pop %v688
        %v690 = vmul.f32 %v664, 1.442695
        %v691 = vpow.pop %v690
        %v692 = vmul.f32 %v665, 1.442695
        %v693 = vpow.pop %v692
        %v694 = vmul.f32 %v666, 1.442695
        %v695 = vpow.pop %v694
        %v696 = vmul.f32 %v667, 1.442695
        %v697 = vpow.pop %v696
        %v698 = vmul.f32 %v668, 1.442695
        %v699 = vpow.pop %v698
        %v700 = vmul.f32 %v669, 1.442695
        %v701 = vpow.pop %v700
        %v702 = vadd.f32 %v671, 1.0
        %v703 = vadd.f32 %v673, 1.0
        %v704 = vadd.f32 %v675, 1.0
        %v705 = vadd.f32 %v677, 1.0
        %v706 = vadd.f32 %v679, 1.0
        %v707 = vadd.f32 %v681, 1.0
        %v708 = vadd.f32 %v683, 1.0
        %v709 = vadd.f32 %v685, 1.0
        %v710 = vadd.f32 %v687, 1.0
        %v711 = vadd.f32 %v689, 1.0
        %v712 = vadd.f32 %v691, 1.0
        %v713 = vadd.f32 %v693, 1.0
        %v714 = vadd.f32 %v695, 1.0
        %v715 = vadd.f32 %v697, 1.0
        %v716 = vadd.f32 %v699, 1.0
        %v717 = vadd.f32 %v701, 1.0
        %v718 = vrcp.pop %v702
        %v719 = vmul.f32 1.0, %v718
        %v720 = vrcp.pop %v703
        %v721 = vmul.f32 1.0, %v720
        %v722 = vrcp.pop %v704
        %v723 = vmul.f32 1.0, %v722
        %v724 = vrcp.pop %v705
        %v725 = vmul.f32 1.0, %v724
        %v726 = vrcp.pop %v706
        %v727 = vmul.f32 1.0, %v726
        %v728 = vrcp.pop %v707
        %v729 = vmul.f32 1.0, %v728
        %v730 = vrcp.pop %v708
        %v731 = vmul.f32 1.0, %v730
        %v732 = vrcp.pop %v709
        %v733 = vmul.f32 1.0, %v732
        %v734 = vrcp.pop %v710
        %v735 = vmul.f32 1.0, %v734
        %v736 = vrcp.pop %v711
        %v737 = vmul.f32 1.0, %v736
        %v738 = vrcp.pop %v712
        %v739 = vmul.f32 1.0, %v738
        %v740 = vrcp.pop %v713
        %v741 = vmul.f32 1.0, %v740
        %v742 = vrcp.pop %v714
        %v743 = vmul.f32 1.0, %v742
        %v744 = vrcp.pop %v715
        %v745 = vmul.f32 1.0, %v744
        %v746 = vrcp.pop %v716
        %v747 = vmul.f32 1.0, %v746
        %v748 = vrcp.pop %v717
        %v749 = vmul.f32 1.0, %v748
        %v750 = vmul.f32 %v592, %v719
        %v751 = vmul.f32 %v595, %v721
        %v752 = vmul.f32 %v600, %v723
        %v753 = vmul.f32 %v603, %v725
        %v754 = vmul.f32 %v608, %v727
        %v755 = vmul.f32 %v611, %v729
        %v756 = vmul.f32 %v616, %v731
        %v757 = vmul.f32 %v619, %v733
        %v758 = vmul.f32 %v624, %v735
        %v759 = vmul.f32 %v627, %v737
        %v760 = vmul.f32 %v632, %v739
        %v761 = vmul.f32 %v635, %v741
        %v762 = vmul.f32 %v640, %v743
        %v763 = vmul.f32 %v643, %v745
        %v764 = vmul.f32 %v648, %v747
        %v765 = vmul.f32 %v651, %v749
        %v766 = vld [vmem:[%s2] sm:$0xf]
        %v767 = vld [vmem:[%s2 + $0x4] sm:$0xf]
        %v768 = vld [vmem:[%s2 + $0x8] sm:$0xf]
        %v769 = vld [vmem:[%s2 + $0xc] sm:$0xf]
        %v770 = vld [vmem:[%s2 + $0x10] sm:$0xf]
        %v771 = vld [vmem:[%s2 + $0x14] sm:$0xf]
        %v772 = vld [vmem:[%s2 + $0x18] sm:$0xf]
        %v773 = vld [vmem:[%s2 + $0x1c] sm:$0xf]
        %v774 = vld [vmem:[%s2 + $0x20] sm:$0xf]
        %v775 = vld [vmem:[%s2 + $0x24] sm:$0xf]
        %v776 = vld [vmem:[%s2 + $0x28] sm:$0xf]
        %v777 = vld [vmem:[%s2 + $0x2c] sm:$0xf]
        %v778 = vld [vmem:[%s2 + $0x30] sm:$0xf]
        %v779 = vld [vmem:[%s2 + $0x34] sm:$0xf]
        %v780 = vld [vmem:[%s2 + $0x38] sm:$0xf]
        %v781 = vld [vmem:[%s2 + $0x3c] sm:$0xf]
        %v782 = vpack.c.bf16 %v751, %v750
        %v783 = vpack.c.bf16 %v753, %v752
        %v784 = vpack.c.bf16 %v755, %v754
        %v785 = vpack.c.bf16 %v757, %v756
        %v786 = vpack.c.bf16 %v759, %v758
        %v787 = vpack.c.bf16 %v761, %v760
        %v788 = vpack.c.bf16 %v763, %v762
        %v789 = vpack.c.bf16 %v765, %v764
        %v790 = vld [vmem:[%s6] sm:$0xff]
        %v791 = vld [vmem:[%s6 + $0x8] sm:$0xff]
        %v792 = vld [vmem:[%s6 + $0x10] sm:$0xff]
        %v793 = vld [vmem:[%s6 + $0x18] sm:$0xff]
        %v794 = vld [vmem:[%s6 + $0x20] sm:$0xff]
        %v795 = vld [vmem:[%s6 + $0x28] sm:$0xff]
        %v796 = vld [vmem:[%s6 + $0x30] sm:$0xff]
        %v797 = vld [vmem:[%s6 + $0x38] sm:$0xff]
        %v798 = vld [vmem:[%s6 + $0x40] sm:$0xff]
        %v799 = vld [vmem:[%s6 + $0x48] sm:$0xff]
        %v800 = vld [vmem:[%s6 + $0x50] sm:$0xff]
        %v801 = vld [vmem:[%s6 + $0x58] sm:$0xff]
        %v802 = vld [vmem:[%s6 + $0x60] sm:$0xff]
        %v803 = vld [vmem:[%s6 + $0x68] sm:$0xff]
        %v804 = vld [vmem:[%s6 + $0x70] sm:$0xff]
        %v805 = vld [vmem:[%s6 + $0x78] sm:$0xff]
        %807 = vset.pattern.permute.xlu0 0
        %808 = vperm.xlu0 %807, %v790
        %v809 = vpop.permute.xlu0 %808
        %812 = vset.pattern.permute.xlu0 0
        %813 = vperm.xlu0 %812, %v791
        %v814 = vpop.permute.xlu0 %813
        %817 = vset.pattern.permute.xlu0 0
        %818 = vperm.xlu0 %817, %v792
        %v819 = vpop.permute.xlu0 %818
        %822 = vset.pattern.permute.xlu0 0
        %823 = vperm.xlu0 %822, %v793
        %v824 = vpop.permute.xlu0 %823
        %827 = vset.pattern.permute.xlu0 0
        %828 = vperm.xlu0 %827, %v794
        %v829 = vpop.permute.xlu0 %828
        %832 = vset.pattern.permute.xlu0 0
        %833 = vperm.xlu0 %832, %v795
        %v834 = vpop.permute.xlu0 %833
        %837 = vset.pattern.permute.xlu0 0
        %838 = vperm.xlu0 %837, %v796
        %v839 = vpop.permute.xlu0 %838
        %842 = vset.pattern.permute.xlu0 0
        %843 = vperm.xlu0 %842, %v797
        %v844 = vpop.permute.xlu0 %843
        %847 = vset.pattern.permute.xlu0 0
        %848 = vperm.xlu0 %847, %v798
        %v849 = vpop.permute.xlu0 %848
        %852 = vset.pattern.permute.xlu0 0
        %853 = vperm.xlu0 %852, %v799
        %v854 = vpop.permute.xlu0 %853
        %857 = vset.pattern.permute.xlu0 0
        %858 = vperm.xlu0 %857, %v800
        %v859 = vpop.permute.xlu0 %858
        %862 = vset.pattern.permute.xlu0 0
        %863 = vperm.xlu0 %862, %v801
        %v864 = vpop.permute.xlu0 %863
        %867 = vset.pattern.permute.xlu0 0
        %868 = vperm.xlu0 %867, %v802
        %v869 = vpop.permute.xlu0 %868
        %872 = vset.pattern.permute.xlu0 0
        %873 = vperm.xlu0 %872, %v803
        %v874 = vpop.permute.xlu0 %873
        %877 = vset.pattern.permute.xlu0 0
        %878 = vperm.xlu0 %877, %v804
        %v879 = vpop.permute.xlu0 %878
        %882 = vset.pattern.permute.xlu0 0
        %883 = vperm.xlu0 %882, %v805
        %v884 = vpop.permute.xlu0 %883
        %v902 = vunpack.c.l.b16 %v766
        %v903 = vunpack.c.l.b16 %v767
        %v904 = vunpack.c.l.b16 %v768
        %v905 = vunpack.c.l.b16 %v769
        %v906 = vunpack.c.l.b16 %v770
        %v907 = vunpack.c.l.b16 %v771
        %v908 = vunpack.c.l.b16 %v772
        %v909 = vunpack.c.l.b16 %v773
        %v910 = vunpack.c.l.b16 %v774
        %v911 = vunpack.c.l.b16 %v775
        %v912 = vunpack.c.l.b16 %v776
        %v913 = vunpack.c.l.b16 %v777
        %v914 = vunpack.c.l.b16 %v778
        %v915 = vunpack.c.l.b16 %v779
        %v916 = vunpack.c.l.b16 %v780
        %v917 = vunpack.c.l.b16 %v781
        %v918 = vpack.c.b16 %v903, %v902
        %v919 = vpack.c.b16 %v905, %v904
        %v920 = vpack.c.b16 %v907, %v906
        %v921 = vpack.c.b16 %v909, %v908
        %v922 = vpack.c.b16 %v911, %v910
        %v923 = vpack.c.b16 %v913, %v912
        %v924 = vpack.c.b16 %v915, %v914
        %v925 = vpack.c.b16 %v917, %v916
        %934 = vmatprep.subr.bf16.mxu0 0
        %935 = vmatpush1.bf16.msra.mxu0 %v782
        %936 = vmatprep.subr.bf16.mxu0 0
        %937 = vmatpush1.bf16.msra.mxu0 %v783
        %938 = vmatprep.subr.bf16.mxu0 0
        %939 = vmatpush1.bf16.msra.mxu0 %v784
        %940 = vmatprep.subr.bf16.mxu0 0
        %941 = vmatpush1.bf16.msra.mxu0 %v785
        %942 = vmatprep.subr.bf16.mxu0 0
        %943 = vmatpush1.bf16.msra.mxu0 %v786
        %944 = vmatprep.subr.bf16.mxu0 0
        %945 = vmatpush1.bf16.msra.mxu0 %v787
        %946 = vmatprep.subr.bf16.mxu0 0
        %947 = vmatpush1.bf16.msra.mxu0 %v788
        %948 = vmatprep.subr.bf16.mxu0 0
        %949 = vmatpush1.bf16.msra.mxu0 %v789
        %950 = vmatprep.subr.bf16.mxu0 0
        %951 = vmatpush1.bf16.msra.mxu0 0
        %952 = vmatprep.subr.bf16.mxu0 0
        %953 = vmatpush1.bf16.msra.mxu0 0
        %954 = vmatprep.subr.bf16.mxu0 0
        %955 = vmatpush1.bf16.msra.mxu0 0
        %956 = vmatprep.subr.bf16.mxu0 0
        %957 = vmatpush1.bf16.msra.mxu0 0
        %958 = vmatprep.subr.bf16.mxu0 0
        %959 = vmatpush1.bf16.msra.mxu0 0
        %960 = vmatprep.subr.bf16.mxu0 0
        %961 = vmatpush1.bf16.msra.mxu0 0
        %962 = vmatprep.subr.bf16.mxu0 0
        %963 = vmatpush1.bf16.msra.mxu0 0
        %964 = vmatprep.subr.bf16.mxu0 0
        %965 = vmatpush1.bf16.msra.mxu0 0
        %966 = vmatprep.mubr.bf16.mxu0 0
        %967 = vmatmul.mubr.bf16.gmra.mrb[0].mxu0 %v918
        %v968 = vpop.f32.mrb[0].mxu0
        %v969 = vadd.f32 %v809, %v968
        %v970 = vpop.f32.mrb[0].mxu0
        %v971 = vpop.f32.mrb[0].mxu0
        %v972 = vadd.f32 %v814, %v971
        %v973 = vpop.f32.mrb[0].mxu0
        %974 = vmatprep.mubr.bf16.mxu0 0
        %975 = vmatmul.mubr.bf16.gmra.mrb[0].mxu0 %v919
        %v976 = vpop.f32.mrb[0].mxu0
        %v977 = vadd.f32 %v819, %v976
        %v978 = vpop.f32.mrb[0].mxu0
        %v979 = vpop.f32.mrb[0].mxu0
        %v980 = vadd.f32 %v824, %v979
        %v981 = vpop.f32.mrb[0].mxu0
        %982 = vmatprep.mubr.bf16.mxu0 0
        %983 = vmatmul.mubr.bf16.gmra.mrb[0].mxu0 %v920
        %v984 = vpop.f32.mrb[0].mxu0
        %v985 = vadd.f32 %v829, %v984
        %v986 = vpop.f32.mrb[0].mxu0
        %v987 = vpop.f32.mrb[0].mxu0
        %v988 = vadd.f32 %v834, %v987
        %v989 = vpop.f32.mrb[0].mxu0
        %990 = vmatprep.mubr.bf16.mxu0 0
        %991 = vmatmul.mubr.bf16.gmra.mrb[0].mxu0 %v921
        %v992 = vpop.f32.mrb[0].mxu0
        %v993 = vadd.f32 %v839, %v992
        %v994 = vpop.f32.mrb[0].mxu0
        %v995 = vpop.f32.mrb[0].mxu0
        %v996 = vadd.f32 %v844, %v995
        %v997 = vpop.f32.mrb[0].mxu0
        %998 = vmatprep.mubr.bf16.mxu0 0
        %999 = vmatmul.mubr.bf16.gmra.mrb[0].mxu0 %v922
        %v1000 = vpop.f32.mrb[0].mxu0
        %v1001 = vadd.f32 %v849, %v1000
        %v1002 = vpop.f32.mrb[0].mxu0
        %v1003 = vpop.f32.mrb[0].mxu0
        %v1004 = vadd.f32 %v854, %v1003
        %v1005 = vpop.f32.mrb[0].mxu0
        %1006 = vmatprep.mubr.bf16.mxu0 0
        %1007 = vmatmul.mubr.bf16.gmra.mrb[0].mxu0 %v923
        %v1008 = vpop.f32.mrb[0].mxu0
        %v1009 = vadd.f32 %v859, %v1008
        %v1010 = vpop.f32.mrb[0].mxu0
        %v1011 = vpop.f32.mrb[0].mxu0
        %v1012 = vadd.f32 %v864, %v1011
        %v1013 = vpop.f32.mrb[0].mxu0
        %1014 = vmatprep.mubr.bf16.mxu0 0
        %1015 = vmatmul.mubr.bf16.gmra.mrb[0].mxu0 %v924
        %v1016 = vpop.f32.mrb[0].mxu0
        %v1017 = vadd.f32 %v869, %v1016
        %v1018 = vpop.f32.mrb[0].mxu0
        %v1019 = vpop.f32.mrb[0].mxu0
        %v1020 = vadd.f32 %v874, %v1019
        %v1021 = vpop.f32.mrb[0].mxu0
        %1022 = vmatprep.mubr.bf16.mxu0 0
        %1023 = vmatmul.mubr.bf16.gmra.mrb[0].mxu0 %v925
        %v1024 = vpop.f32.mrb[0].mxu0
        %v1025 = vadd.f32 %v879, %v1024
        %v1026 = vpop.f32.mrb[0].mxu0
        %v1027 = vpop.f32.mrb[0].mxu0
        %v1028 = vadd.f32 %v884, %v1027
        %v1029 = vpop.f32.mrb[0].mxu0
        %1030 = vdwg.mxu0
        %v1031 = vxor.u32 %v969, 2147483648
        %v1032 = vxor.u32 %v972, 2147483648
        %v1033 = vxor.u32 %v977, 2147483648
        %v1034 = vxor.u32 %v980, 2147483648
        %v1035 = vxor.u32 %v985, 2147483648
        %v1036 = vxor.u32 %v988, 2147483648
        %v1037 = vxor.u32 %v993, 2147483648
        %v1038 = vxor.u32 %v996, 2147483648
        %v1039 = vxor.u32 %v1001, 2147483648
        %v1040 = vxor.u32 %v1004, 2147483648
        %v1041 = vxor.u32 %v1009, 2147483648
        %v1042 = vxor.u32 %v1012, 2147483648
        %v1043 = vxor.u32 %v1017, 2147483648
        %v1044 = vxor.u32 %v1020, 2147483648
        %v1045 = vxor.u32 %v1025, 2147483648
        %v1046 = vxor.u32 %v1028, 2147483648
        %v1047 = vmul.f32 %v1031, 1.442695
        %v1048 = vpow.pop %v1047
        %v1049 = vmul.f32 %v1032, 1.442695
        %v1050 = vpow.pop %v1049
        %v1051 = vmul.f32 %v1033, 1.442695
        %v1052 = vpow.pop %v1051
        %v1053 = vmul.f32 %v1034, 1.442695
        %v1054 = vpow.pop %v1053
        %v1055 = vmul.f32 %v1035, 1.442695
        %v1056 = vpow.pop %v1055
        %v1057 = vmul.f32 %v1036, 1.442695
        %v1058 = vpow.pop %v1057
        %v1059 = vmul.f32 %v1037, 1.442695
        %v1060 = vpow.pop %v1059
        %v1061 = vmul.f32 %v1038, 1.442695
        %v1062 = vpow.pop %v1061
        %v1063 = vmul.f32 %v1039, 1.442695
        %v1064 = vpow.pop %v1063
        %v1065 = vmul.f32 %v1040, 1.442695
        %v1066 = vpow.pop %v1065
        %v1067 = vmul.f32 %v1041, 1.442695
        %v1068 = vpow.pop %v1067
        %v1069 = vmul.f32 %v1042, 1.442695
        %v1070 = vpow.pop %v1069
        %v1071 = vmul.f32 %v1043, 1.442695
        %v1072 = vpow.pop %v1071
        %v1073 = vmul.f32 %v1044, 1.442695
        %v1074 = vpow.pop %v1073
        %v1075 = vmul.f32 %v1045, 1.442695
        %v1076 = vpow.pop %v1075
        %v1077 = vmul.f32 %v1046, 1.442695
        %v1078 = vpow.pop %v1077
        %v1079 = vadd.f32 %v1048, 1.0
        %v1080 = vadd.f32 %v1050, 1.0
        %v1081 = vadd.f32 %v1052, 1.0
        %v1082 = vadd.f32 %v1054, 1.0
        %v1083 = vadd.f32 %v1056, 1.0
        %v1084 = vadd.f32 %v1058, 1.0
        %v1085 = vadd.f32 %v1060, 1.0
        %v1086 = vadd.f32 %v1062, 1.0
        %v1087 = vadd.f32 %v1064, 1.0
        %v1088 = vadd.f32 %v1066, 1.0
        %v1089 = vadd.f32 %v1068, 1.0
        %v1090 = vadd.f32 %v1070, 1.0
        %v1091 = vadd.f32 %v1072, 1.0
        %v1092 = vadd.f32 %v1074, 1.0
        %v1093 = vadd.f32 %v1076, 1.0
        %v1094 = vadd.f32 %v1078, 1.0
        %v1095 = vrcp.pop %v1079
        %v1096 = vmul.f32 1.0, %v1095
        %v1097 = vrcp.pop %v1080
        %v1098 = vmul.f32 1.0, %v1097
        %v1099 = vrcp.pop %v1081
        %v1100 = vmul.f32 1.0, %v1099
        %v1101 = vrcp.pop %v1082
        %v1102 = vmul.f32 1.0, %v1101
        %v1103 = vrcp.pop %v1083
        %v1104 = vmul.f32 1.0, %v1103
        %v1105 = vrcp.pop %v1084
        %v1106 = vmul.f32 1.0, %v1105
        %v1107 = vrcp.pop %v1085
        %v1108 = vmul.f32 1.0, %v1107
        %v1109 = vrcp.pop %v1086
        %v1110 = vmul.f32 1.0, %v1109
        %v1111 = vrcp.pop %v1087
        %v1112 = vmul.f32 1.0, %v1111
        %v1113 = vrcp.pop %v1088
        %v1114 = vmul.f32 1.0, %v1113
        %v1115 = vrcp.pop %v1089
        %v1116 = vmul.f32 1.0, %v1115
        %v1117 = vrcp.pop %v1090
        %v1118 = vmul.f32 1.0, %v1117
        %v1119 = vrcp.pop %v1091
        %v1120 = vmul.f32 1.0, %v1119
        %v1121 = vrcp.pop %v1092
        %v1122 = vmul.f32 1.0, %v1121
        %v1123 = vrcp.pop %v1093
        %v1124 = vmul.f32 1.0, %v1123
        %v1125 = vrcp.pop %v1094
        %v1126 = vmul.f32 1.0, %v1125
        %v1127 = vmul.f32 %v969, %v1096
        %v1128 = vmul.f32 %v972, %v1098
        %v1129 = vmul.f32 %v977, %v1100
        %v1130 = vmul.f32 %v980, %v1102
        %v1131 = vmul.f32 %v985, %v1104
        %v1132 = vmul.f32 %v988, %v1106
        %v1133 = vmul.f32 %v993, %v1108
        %v1134 = vmul.f32 %v996, %v1110
        %v1135 = vmul.f32 %v1001, %v1112
        %v1136 = vmul.f32 %v1004, %v1114
        %v1137 = vmul.f32 %v1009, %v1116
        %v1138 = vmul.f32 %v1012, %v1118
        %v1139 = vmul.f32 %v1017, %v1120
        %v1140 = vmul.f32 %v1020, %v1122
        %v1141 = vmul.f32 %v1025, %v1124
        %v1142 = vmul.f32 %v1028, %v1126
        %v1143 = vld [vmem:[%s3] sm:$0xf]
        %v1144 = vld [vmem:[%s3 + $0x4] sm:$0xf]
        %v1145 = vld [vmem:[%s3 + $0x8] sm:$0xf]
        %v1146 = vld [vmem:[%s3 + $0xc] sm:$0xf]
        %v1147 = vld [vmem:[%s3 + $0x10] sm:$0xf]
        %v1148 = vld [vmem:[%s3 + $0x14] sm:$0xf]
        %v1149 = vld [vmem:[%s3 + $0x18] sm:$0xf]
        %v1150 = vld [vmem:[%s3 + $0x1c] sm:$0xf]
        %v1151 = vld [vmem:[%s3 + $0x20] sm:$0xf]
        %v1152 = vld [vmem:[%s3 + $0x24] sm:$0xf]
        %v1153 = vld [vmem:[%s3 + $0x28] sm:$0xf]
        %v1154 = vld [vmem:[%s3 + $0x2c] sm:$0xf]
        %v1155 = vld [vmem:[%s3 + $0x30] sm:$0xf]
        %v1156 = vld [vmem:[%s3 + $0x34] sm:$0xf]
        %v1157 = vld [vmem:[%s3 + $0x38] sm:$0xf]
        %v1158 = vld [vmem:[%s3 + $0x3c] sm:$0xf]
        %v1159 = vpack.c.bf16 %v1128, %v1127
        %v1160 = vpack.c.bf16 %v1130, %v1129
        %v1161 = vpack.c.bf16 %v1132, %v1131
        %v1162 = vpack.c.bf16 %v1134, %v1133
        %v1163 = vpack.c.bf16 %v1136, %v1135
        %v1164 = vpack.c.bf16 %v1138, %v1137
        %v1165 = vpack.c.bf16 %v1140, %v1139
        %v1166 = vpack.c.bf16 %v1142, %v1141
        %v1167 = vld [vmem:[%s7] sm:$0xff]
        %v1168 = vld [vmem:[%s7 + $0x8] sm:$0xff]
        %v1169 = vld [vmem:[%s7 + $0x10] sm:$0xff]
        %v1170 = vld [vmem:[%s7 + $0x18] sm:$0xff]
        %v1171 = vld [vmem:[%s7 + $0x20] sm:$0xff]
        %v1172 = vld [vmem:[%s7 + $0x28] sm:$0xff]
        %v1173 = vld [vmem:[%s7 + $0x30] sm:$0xff]
        %v1174 = vld [vmem:[%s7 + $0x38] sm:$0xff]
        %v1175 = vld [vmem:[%s7 + $0x40] sm:$0xff]
        %v1176 = vld [vmem:[%s7 + $0x48] sm:$0xff]
        %v1177 = vld [vmem:[%s7 + $0x50] sm:$0xff]
        %v1178 = vld [vmem:[%s7 + $0x58] sm:$0xff]
        %v1179 = vld [vmem:[%s7 + $0x60] sm:$0xff]
        %v1180 = vld [vmem:[%s7 + $0x68] sm:$0xff]
        %v1181 = vld [vmem:[%s7 + $0x70] sm:$0xff]
        %v1182 = vld [vmem:[%s7 + $0x78] sm:$0xff]
        %1184 = vset.pattern.permute.xlu0 0
        %1185 = vperm.xlu0 %1184, %v1167
        %v1186 = vpop.permute.xlu0 %1185
        %1189 = vset.pattern.permute.xlu0 0
        %1190 = vperm.xlu0 %1189, %v1168
        %v1191 = vpop.permute.xlu0 %1190
        %1194 = vset.pattern.permute.xlu0 0
        %1195 = vperm.xlu0 %1194, %v1169
        %v1196 = vpop.permute.xlu0 %1195
        %1199 = vset.pattern.permute.xlu0 0
        %1200 = vperm.xlu0 %1199, %v1170
        %v1201 = vpop.permute.xlu0 %1200
        %1204 = vset.pattern.permute.xlu0 0
        %1205 = vperm.xlu0 %1204, %v1171
        %v1206 = vpop.permute.xlu0 %1205
        %1209 = vset.pattern.permute.xlu0 0
        %1210 = vperm.xlu0 %1209, %v1172
        %v1211 = vpop.permute.xlu0 %1210
        %1214 = vset.pattern.permute.xlu0 0
        %1215 = vperm.xlu0 %1214, %v1173
        %v1216 = vpop.permute.xlu0 %1215
        %1219 = vset.pattern.permute.xlu0 0
        %1220 = vperm.xlu0 %1219, %v1174
        %v1221 = vpop.permute.xlu0 %1220
        %1224 = vset.pattern.permute.xlu0 0
        %1225 = vperm.xlu0 %1224, %v1175
        %v1226 = vpop.permute.xlu0 %1225
        %1229 = vset.pattern.permute.xlu0 0
        %1230 = vperm.xlu0 %1229, %v1176
        %v1231 = vpop.permute.xlu0 %1230
        %1234 = vset.pattern.permute.xlu0 0
        %1235 = vperm.xlu0 %1234, %v1177
        %v1236 = vpop.permute.xlu0 %1235
        %1239 = vset.pattern.permute.xlu0 0
        %1240 = vperm.xlu0 %1239, %v1178
        %v1241 = vpop.permute.xlu0 %1240
        %1244 = vset.pattern.permute.xlu0 0
        %1245 = vperm.xlu0 %1244, %v1179
        %v1246 = vpop.permute.xlu0 %1245
        %1249 = vset.pattern.permute.xlu0 0
        %1250 = vperm.xlu0 %1249, %v1180
        %v1251 = vpop.permute.xlu0 %1250
        %1254 = vset.pattern.permute.xlu0 0
        %1255 = vperm.xlu0 %1254, %v1181
        %v1256 = vpop.permute.xlu0 %1255
        %1259 = vset.pattern.permute.xlu0 0
        %1260 = vperm.xlu0 %1259, %v1182
        %v1261 = vpop.permute.xlu0 %1260
        %v1279 = vunpack.c.l.b16 %v1143
        %v1280 = vunpack.c.l.b16 %v1144
        %v1281 = vunpack.c.l.b16 %v1145
        %v1282 = vunpack.c.l.b16 %v1146
        %v1283 = vunpack.c.l.b16 %v1147
        %v1284 = vunpack.c.l.b16 %v1148
        %v1285 = vunpack.c.l.b16 %v1149
        %v1286 = vunpack.c.l.b16 %v1150
        %v1287 = vunpack.c.l.b16 %v1151
        %v1288 = vunpack.c.l.b16 %v1152
        %v1289 = vunpack.c.l.b16 %v1153
        %v1290 = vunpack.c.l.b16 %v1154
        %v1291 = vunpack.c.l.b16 %v1155
        %v1292 = vunpack.c.l.b16 %v1156
        %v1293 = vunpack.c.l.b16 %v1157
        %v1294 = vunpack.c.l.b16 %v1158
        %v1295 = vpack.c.b16 %v1280, %v1279
        %v1296 = vpack.c.b16 %v1282, %v1281
        %v1297 = vpack.c.b16 %v1284, %v1283
        %v1298 = vpack.c.b16 %v1286, %v1285
        %v1299 = vpack.c.b16 %v1288, %v1287
        %v1300 = vpack.c.b16 %v1290, %v1289
        %v1301 = vpack.c.b16 %v1292, %v1291
        %v1302 = vpack.c.b16 %v1294, %v1293
        %1311 = vmatprep.subr.bf16.mxu0 0
        %1312 = vmatpush1.bf16.msra.mxu0 %v1159
        %1313 = vmatprep.subr.bf16.mxu0 0
        %1314 = vmatpush1.bf16.msra.mxu0 %v1160
        %1315 = vmatprep.subr.bf16.mxu0 0
        %1316 = vmatpush1.bf16.msra.mxu0 %v1161
        %1317 = vmatprep.subr.bf16.mxu0 0
        %1318 = vmatpush1.bf16.msra.mxu0 %v1162
        %1319 = vmatprep.subr.bf16.mxu0 0
        %1320 = vmatpush1.bf16.msra.mxu0 %v1163
        %1321 = vmatprep.subr.bf16.mxu0 0
        %1322 = vmatpush1.bf16.msra.mxu0 %v1164
        %1323 = vmatprep.subr.bf16.mxu0 0
        %1324 = vmatpush1.bf16.msra.mxu0 %v1165
        %1325 = vmatprep.subr.bf16.mxu0 0
        %1326 = vmatpush1.bf16.msra.mxu0 %v1166
        %1327 = vmatprep.subr.bf16.mxu0 0
        %1328 = vmatpush1.bf16.msra.mxu0 0
        %1329 = vmatprep.subr.bf16.mxu0 0
        %1330 = vmatpush1.bf16.msra.mxu0 0
        %1331 = vmatprep.subr.bf16.mxu0 0
        %1332 = vmatpush1.bf16.msra.mxu0 0
        %1333 = vmatprep.subr.bf16.mxu0 0
        %1334 = vmatpush1.bf16.msra.mxu0 0
        %1335 = vmatprep.subr.bf16.mxu0 0
        %1336 = vmatpush1.bf16.msra.mxu0 0
        %1337 = vmatprep.subr.bf16.mxu0 0
        %1338 = vmatpush1.bf16.msra.mxu0 0
        %1339 = vmatprep.subr.bf16.mxu0 0
        %1340 = vmatpush1.bf16.msra.mxu0 0
        %1341 = vmatprep.subr.bf16.mxu0 0
        %1342 = vmatpush1.bf16.msra.mxu0 0
        %1343 = vmatprep.mubr.bf16.mxu0 0
        %1344 = vmatmul.mubr.bf16.gmra.mrb[0].mxu0 %v1295
        %v1345 = vpop.f32.mrb[0].mxu0
        %v1346 = vadd.f32 %v1186, %v1345
        %v1347 = vpop.f32.mrb[0].mxu0
        %v1348 = vpop.f32.mrb[0].mxu0
        %v1349 = vadd.f32 %v1191, %v1348
        %v1350 = vpop.f32.mrb[0].mxu0
        %1351 = vmatprep.mubr.bf16.mxu0 0
        %1352 = vmatmul.mubr.bf16.gmra.mrb[0].mxu0 %v1296
        %v1353 = vpop.f32.mrb[0].mxu0
        %v1354 = vadd.f32 %v1196, %v1353
        %v1355 = vpop.f32.mrb[0].mxu0
        %v1356 = vpop.f32.mrb[0].mxu0
        %v1357 = vadd.f32 %v1201, %v1356
        %v1358 = vpop.f32.mrb[0].mxu0
        %1359 = vmatprep.mubr.bf16.mxu0 0
        %1360 = vmatmul.mubr.bf16.gmra.mrb[0].mxu0 %v1297
        %v1361 = vpop.f32.mrb[0].mxu0
        %v1362 = vadd.f32 %v1206, %v1361
        %v1363 = vpop.f32.mrb[0].mxu0
        %v1364 = vpop.f32.mrb[0].mxu0
        %v1365 = vadd.f32 %v1211, %v1364
        %v1366 = vpop.f32.mrb[0].mxu0
        %1367 = vmatprep.mubr.bf16.mxu0 0
        %1368 = vmatmul.mubr.bf16.gmra.mrb[0].mxu0 %v1298
        %v1369 = vpop.f32.mrb[0].mxu0
        %v1370 = vadd.f32 %v1216, %v1369
        %v1371 = vpop.f32.mrb[0].mxu0
        %v1372 = vpop.f32.mrb[0].mxu0
        %v1373 = vadd.f32 %v1221, %v1372
        %v1374 = vpop.f32.mrb[0].mxu0
        %1375 = vmatprep.mubr.bf16.mxu0 0
        %1376 = vmatmul.mubr.bf16.gmra.mrb[0].mxu0 %v1299
        %v1377 = vpop.f32.mrb[0].mxu0
        %v1378 = vadd.f32 %v1226, %v1377
        %v1379 = vpop.f32.mrb[0].mxu0
        %v1380 = vpop.f32.mrb[0].mxu0
        %v1381 = vadd.f32 %v1231, %v1380
        %v1382 = vpop.f32.mrb[0].mxu0
        %1383 = vmatprep.mubr.bf16.mxu0 0
        %1384 = vmatmul.mubr.bf16.gmra.mrb[0].mxu0 %v1300
        %v1385 = vpop.f32.mrb[0].mxu0
        %v1386 = vadd.f32 %v1236, %v1385
        %v1387 = vpop.f32.mrb[0].mxu0
        %v1388 = vpop.f32.mrb[0].mxu0
        %v1389 = vadd.f32 %v1241, %v1388
        %v1390 = vpop.f32.mrb[0].mxu0
        %1391 = vmatprep.mubr.bf16.mxu0 0
        %1392 = vmatmul.mubr.bf16.gmra.mrb[0].mxu0 %v1301
        %v1393 = vpop.f32.mrb[0].mxu0
        %v1394 = vadd.f32 %v1246, %v1393
        %v1395 = vpop.f32.mrb[0].mxu0
        %v1396 = vpop.f32.mrb[0].mxu0
        %v1397 = vadd.f32 %v1251, %v1396
        %v1398 = vpop.f32.mrb[0].mxu0
        %1399 = vmatprep.mubr.bf16.mxu0 0
        %1400 = vmatmul.mubr.bf16.gmra.mrb[0].mxu0 %v1302
        %v1401 = vpop.f32.mrb[0].mxu0
        %v1402 = vadd.f32 %v1256, %v1401
        %v1403 = vpop.f32.mrb[0].mxu0
        %v1404 = vpop.f32.mrb[0].mxu0
        %v1405 = vadd.f32 %v1261, %v1404
        %v1406 = vpop.f32.mrb[0].mxu0
        %1407 = vdwg.mxu0
        %v1408 = vxor.u32 %v1346, 2147483648
        %v1409 = vxor.u32 %v1349, 2147483648
        %v1410 = vxor.u32 %v1354, 2147483648
        %v1411 = vxor.u32 %v1357, 2147483648
        %v1412 = vxor.u32 %v1362, 2147483648
        %v1413 = vxor.u32 %v1365, 2147483648
        %v1414 = vxor.u32 %v1370, 2147483648
        %v1415 = vxor.u32 %v1373, 2147483648
        %v1416 = vxor.u32 %v1378, 2147483648
        %v1417 = vxor.u32 %v1381, 2147483648
        %v1418 = vxor.u32 %v1386, 2147483648
        %v1419 = vxor.u32 %v1389, 2147483648
        %v1420 = vxor.u32 %v1394, 2147483648
        %v1421 = vxor.u32 %v1397, 2147483648
        %v1422 = vxor.u32 %v1402, 2147483648
        %v1423 = vxor.u32 %v1405, 2147483648
        %v1424 = vmul.f32 %v1408, 1.442695
        %v1425 = vpow.pop %v1424
        %v1426 = vmul.f32 %v1409, 1.442695
        %v1427 = vpow.pop %v1426
        %v1428 = vmul.f32 %v1410, 1.442695
        %v1429 = vpow.pop %v1428
        %v1430 = vmul.f32 %v1411, 1.442695
        %v1431 = vpow.pop %v1430
        %v1432 = vmul.f32 %v1412, 1.442695
        %v1433 = vpow.pop %v1432
        %v1434 = vmul.f32 %v1413, 1.442695
        %v1435 = vpow.pop %v1434
        %v1436 = vmul.f32 %v1414, 1.442695
        %v1437 = vpow.pop %v1436
        %v1438 = vmul.f32 %v1415, 1.442695
        %v1439 = vpow.pop %v1438
        %v1440 = vmul.f32 %v1416, 1.442695
        %v1441 = vpow.pop %v1440
        %v1442 = vmul.f32 %v1417, 1.442695
        %v1443 = vpow.pop %v1442
        %v1444 = vmul.f32 %v1418, 1.442695
        %v1445 = vpow.pop %v1444
        %v1446 = vmul.f32 %v1419, 1.442695
        %v1447 = vpow.pop %v1446
        %v1448 = vmul.f32 %v1420, 1.442695
        %v1449 = vpow.pop %v1448
        %v1450 = vmul.f32 %v1421, 1.442695
        %v1451 = vpow.pop %v1450
        %v1452 = vmul.f32 %v1422, 1.442695
        %v1453 = vpow.pop %v1452
        %v1454 = vmul.f32 %v1423, 1.442695
        %v1455 = vpow.pop %v1454
        %v1456 = vadd.f32 %v1425, 1.0
        %v1457 = vadd.f32 %v1427, 1.0
        %v1458 = vadd.f32 %v1429, 1.0
        %v1459 = vadd.f32 %v1431, 1.0
        %v1460 = vadd.f32 %v1433, 1.0
        %v1461 = vadd.f32 %v1435, 1.0
        %v1462 = vadd.f32 %v1437, 1.0
        %v1463 = vadd.f32 %v1439, 1.0
        %v1464 = vadd.f32 %v1441, 1.0
        %v1465 = vadd.f32 %v1443, 1.0
        %v1466 = vadd.f32 %v1445, 1.0
        %v1467 = vadd.f32 %v1447, 1.0
        %v1468 = vadd.f32 %v1449, 1.0
        %v1469 = vadd.f32 %v1451, 1.0
        %v1470 = vadd.f32 %v1453, 1.0
        %v1471 = vadd.f32 %v1455, 1.0
        %v1472 = vrcp.pop %v1456
        %v1473 = vmul.f32 1.0, %v1472
        %v1474 = vrcp.pop %v1457
        %v1475 = vmul.f32 1.0, %v1474
        %v1476 = vrcp.pop %v1458
        %v1477 = vmul.f32 1.0, %v1476
        %v1478 = vrcp.pop %v1459
        %v1479 = vmul.f32 1.0, %v1478
        %v1480 = vrcp.pop %v1460
        %v1481 = vmul.f32 1.0, %v1480
        %v1482 = vrcp.pop %v1461
        %v1483 = vmul.f32 1.0, %v1482
        %v1484 = vrcp.pop %v1462
        %v1485 = vmul.f32 1.0, %v1484
        %v1486 = vrcp.pop %v1463
        %v1487 = vmul.f32 1.0, %v1486
        %v1488 = vrcp.pop %v1464
        %v1489 = vmul.f32 1.0, %v1488
        %v1490 = vrcp.pop %v1465
        %v1491 = vmul.f32 1.0, %v1490
        %v1492 = vrcp.pop %v1466
        %v1493 = vmul.f32 1.0, %v1492
        %v1494 = vrcp.pop %v1467
        %v1495 = vmul.f32 1.0, %v1494
        %v1496 = vrcp.pop %v1468
        %v1497 = vmul.f32 1.0, %v1496
        %v1498 = vrcp.pop %v1469
        %v1499 = vmul.f32 1.0, %v1498
        %v1500 = vrcp.pop %v1470
        %v1501 = vmul.f32 1.0, %v1500
        %v1502 = vrcp.pop %v1471
        %v1503 = vmul.f32 1.0, %v1502
        %v1504 = vmul.f32 %v1346, %v1473
        %v1505 = vmul.f32 %v1349, %v1475
        %v1506 = vmul.f32 %v1354, %v1477
        %v1507 = vmul.f32 %v1357, %v1479
        %v1508 = vmul.f32 %v1362, %v1481
        %v1509 = vmul.f32 %v1365, %v1483
        %v1510 = vmul.f32 %v1370, %v1485
        %v1511 = vmul.f32 %v1373, %v1487
        %v1512 = vmul.f32 %v1378, %v1489
        %v1513 = vmul.f32 %v1381, %v1491
        %v1514 = vmul.f32 %v1386, %v1493
        %v1515 = vmul.f32 %v1389, %v1495
        %v1516 = vmul.f32 %v1394, %v1497
        %v1517 = vmul.f32 %v1397, %v1499
        %v1518 = vmul.f32 %v1402, %v1501
        %v1519 = vmul.f32 %v1405, %v1503
        %v1520 = vld [vmem:[%s4] sm:$0xf]
        %v1521 = vld [vmem:[%s4 + $0x4] sm:$0xf]
        %v1522 = vpack.c.bf16 %v1505, %v1504
        %v1523 = vpack.c.bf16 %v1507, %v1506
        %v1524 = vpack.c.bf16 %v1509, %v1508
        %v1525 = vpack.c.bf16 %v1511, %v1510
        %v1526 = vpack.c.bf16 %v1513, %v1512
        %v1527 = vpack.c.bf16 %v1515, %v1514
        %v1528 = vpack.c.bf16 %v1517, %v1516
        %v1529 = vpack.c.bf16 %v1519, %v1518
        %v1530 = vld [vmem:[%s8] sm:$0xff]
        %v1531 = vld [vmem:[%s8 + $0x8] sm:$0xff]
        %1533 = vset.pattern.permute.xlu0 0
        %1534 = vperm.xlu0 %1533, %v1530
        %v1535 = vpop.permute.xlu0 %1534
        %1538 = vset.pattern.permute.xlu0 0
        %1539 = vperm.xlu0 %1538, %v1531
        %v1540 = vpop.permute.xlu0 %1539
        %v1544 = vunpack.c.l.b16 %v1520
        %v1545 = vunpack.c.l.b16 %v1521
        %v1546 = vpack.c.b16 %v1545, %v1544
        %1548 = vmatprep.subr.bf16.mxu0 0
        %1549 = vmatpush1.bf16.msra.mxu0 %v1522
        %1550 = vmatprep.subr.bf16.mxu0 0
        %1551 = vmatpush1.bf16.msra.mxu0 %v1523
        %1552 = vmatprep.subr.bf16.mxu0 0
        %1553 = vmatpush1.bf16.msra.mxu0 %v1524
        %1554 = vmatprep.subr.bf16.mxu0 0
        %1555 = vmatpush1.bf16.msra.mxu0 %v1525
        %1556 = vmatprep.subr.bf16.mxu0 0
        %1557 = vmatpush1.bf16.msra.mxu0 %v1526
        %1558 = vmatprep.subr.bf16.mxu0 0
        %1559 = vmatpush1.bf16.msra.mxu0 %v1527
        %1560 = vmatprep.subr.bf16.mxu0 0
        %1561 = vmatpush1.bf16.msra.mxu0 %v1528
        %1562 = vmatprep.subr.bf16.mxu0 0
        %1563 = vmatpush1.bf16.msra.mxu0 %v1529
        %1564 = vmatprep.subr.bf16.mxu0 0
        %1565 = vmatpush1.bf16.msra.mxu0 0
        %1566 = vmatprep.subr.bf16.mxu0 0
        %1567 = vmatpush1.bf16.msra.mxu0 0
        %1568 = vmatprep.subr.bf16.mxu0 0
        %1569 = vmatpush1.bf16.msra.mxu0 0
        %1570 = vmatprep.subr.bf16.mxu0 0
        %1571 = vmatpush1.bf16.msra.mxu0 0
        %1572 = vmatprep.subr.bf16.mxu0 0
        %1573 = vmatpush1.bf16.msra.mxu0 0
        %1574 = vmatprep.subr.bf16.mxu0 0
        %1575 = vmatpush1.bf16.msra.mxu0 0
        %1576 = vmatprep.subr.bf16.mxu0 0
        %1577 = vmatpush1.bf16.msra.mxu0 0
        %1578 = vmatprep.subr.bf16.mxu0 0
        %1579 = vmatpush1.bf16.msra.mxu0 0
        %1580 = vmatprep.mubr.bf16.mxu0 0
        %1581 = vmatmul.mubr.bf16.gmra.mrb[0].mxu0 %v1546
        %v1582 = vpop.f32.mrb[0].mxu0
        %v1583 = vadd.f32 %v1535, %v1582
        %v1584 = vpop.f32.mrb[0].mxu0
        %v1585 = vpop.f32.mrb[0].mxu0
        %v1586 = vadd.f32 %v1540, %v1585
        %v1587 = vpop.f32.mrb[0].mxu0
        %1588 = vdwg.mxu0
        %1589 = vst [vmem:[%s372] sm:$0xff] %v1583
        %1590 = vst [vmem:[%s372 + $0x8] sm:$0xff] %v1586
        %s1591 = sand.u32 %s222, 1
        %s1592 = sand.u32 %s222, 1
        %s1593 = smul.addr %s1592, 16
        %s1594 = scalar_lea.vmem [#allocation3], %s1593
        // Predicated region
        $region95: #{pinn_forward.1} parent=89 // pred_check
          %p1595 = pneg %p232
        $region96: #{pinn_forward.1} parent=89 // pred_check_branch
          %1597 = sbr.rel (%p1595) target = $region98
        $region97: #{pinn_forward.1} parent=89 // pred_region
          %s1598 = smul.addr %s20, 8
          %s1599 = scalar_lea.vmem %s9, %s1598
          // Predicated region
          $region99: #{pinn_forward.1} parent=97 // pred_check
            _
          $region100: #{pinn_forward.1} parent=97 // pred_check_branch
            %1601 = sbr.rel (0) target = $region102
          $region101: #{pinn_forward.1} parent=97 // pred_region
            // Predicated region
            $region103: #{pinn_forward.1} parent=101 // pred_check
              _
            $region104: #{pinn_forward.1} parent=101 // pred_check_branch
              %1603 = sbr.rel (0) target = $region106
            $region105: #{pinn_forward.1} parent=101 // pred_region
              // Predicated region
              $region118: #{pinn_forward.1} parent=105 // pred_check
                _
              $region119: #{pinn_forward.1} parent=105 // pred_check_branch
                %1620 = sbr.rel (0) target = $region121
              $region120: #{pinn_forward.1} parent=105 // pred_region
                loop: start=0, step=1, limit=1
                $region122: #{pinn_forward.1} parent=120 // loop_pre_header
                  _
                $region123: #{pinn_forward.1} parent=120 // loop_header
                  %s1622 = sphi 0, %s1626
                  %p1623 = scmp.ge.s32.totalorder %s1622, 1
                  %s1627 = sphi %s1594, %s1594
                  %s1628 = sphi %s1599, %s1599
                $region124: #{pinn_forward.1} parent=120 // loop_header_branch
                  %1625 = sbr.rel (%p1623) target = $region128
                $region125: #{pinn_forward.1} parent=120 // loop_body
                  %v1629 = vld [vmem:[%s1627] sm:$0xff]
                  %1630 = vst [vmem:[%s1628] sm:$0xff] %v1629
                  %v1631 = vld [vmem:[%s1627 + $0x8] sm:$0xff]
                  %1632 = vst [vmem:[%s1628 + $0x10] sm:$0xff] %v1631
                $region126: #{pinn_forward.1} parent=120 // loop_footer
                  %s1626 = sadd.s32 1, %s1622
                $region127: #{pinn_forward.1} parent=120 // loop_footer_branch
                  %1621 = sbr.rel target = $region123
                $region128: #{pinn_forward.1} parent=120 // loop_exit
                  _
              $region121: #{pinn_forward.1} parent=105 // pred_fallthru
                _
              // Predicated region
              $region129: #{pinn_forward.1} parent=105 // pred_check
                _
              $region130: #{pinn_forward.1} parent=105 // pred_check_branch
                %1634 = sbr.rel target = $region132
              $region131: #{pinn_forward.1} parent=105 // pred_region
                _
              $region132: #{pinn_forward.1} parent=105 // pred_fallthru
                _
            $region106: #{pinn_forward.1} parent=101 // pred_fallthru
              _
            // Predicated region
            $region107: #{pinn_forward.1} parent=101 // pred_check
              _
            $region108: #{pinn_forward.1} parent=101 // pred_check_branch
              %1605 = sbr.rel target = $region110
            $region109: #{pinn_forward.1} parent=101 // pred_region
              loop: start=0, step=1, limit=1
              $region111: #{pinn_forward.1} parent=109 // loop_pre_header
                _
              $region112: #{pinn_forward.1} parent=109 // loop_header
                %s1608 = sphi 0, %s1612
                %p1609 = scmp.ge.s32.totalorder %s1608, 1
                %s1613 = sphi %s1594, %s1594
                %s1614 = sphi %s1599, %s1599
              $region113: #{pinn_forward.1} parent=109 // loop_header_branch
                %1611 = sbr.rel (%p1609) target = $region117
              $region114: #{pinn_forward.1} parent=109 // loop_body
                %v1615 = vld [vmem:[%s1613] sm:$0xff]
                %1616 = vst [vmem:[%s1614] sm:$0xff] %v1615
                %v1617 = vld [vmem:[%s1613 + $0x8] sm:$0xff]
                %1618 = vst [vmem:[%s1614 + $0x10] sm:$0xff] %v1617
              $region115: #{pinn_forward.1} parent=109 // loop_footer
                %s1612 = sadd.s32 1, %s1608
              $region116: #{pinn_forward.1} parent=109 // loop_footer_branch
                %1607 = sbr.rel target = $region112
              $region117: #{pinn_forward.1} parent=109 // loop_exit
                _
            $region110: #{pinn_forward.1} parent=101 // pred_fallthru
              _
          $region102: #{pinn_forward.1} parent=97 // pred_fallthru
            _
          %1635 = vnop
        $region98: #{pinn_forward.1} parent=89 // pred_fallthru
          _
      $region90: #{pinn_forward.1} parent=5 // pred_fallthru
        _
      %p1636 = scmp.le.s32.totalorder 2, %s15
      // Predicated region
      $region133: #{pinn_forward.1} parent=5 // pred_check
        %p1637 = pneg %p1636
      $region134: #{pinn_forward.1} parent=5 // pred_check_branch
        %1639 = sbr.rel (%p1637) target = $region136
      $region135: #{pinn_forward.1} parent=5 // pred_region
        %s1640 = ssub.s32 %s15, 2
        // Predicated region
        $region137: #{pinn_forward.1} parent=135 // pred_check
          %p1641 = pneg %p238
        $region138: #{pinn_forward.1} parent=135 // pred_check_branch
          %1643 = sbr.rel (%p1641) target = $region140
        $region139: #{pinn_forward.1} parent=135 // pred_region
          %s1644 = sand.u32 %s223, 1
          %s1645 = sand.u32 %s223, 1
          %s1646 = smul.addr %s1645, 16
          %s1647 = scalar_lea.vmem [#allocation3], %s1646
        $region140: #{pinn_forward.1} parent=135 // pred_fallthru
          _
      $region136: #{pinn_forward.1} parent=5 // pred_fallthru
        _
    $region6: #{pinn_forward.1} parent=1 // loop_footer
      %s19 = sadd.s32 1, %s15
    $region7: #{pinn_forward.1} parent=1 // loop_footer_branch
      %14 = sbr.rel target = $region3
    $region8: #{pinn_forward.1} parent=1 // loop_exit
      _

</llo_original>
